<compile_context>
chip_gen: v6e
topology: v6e:2x2x1
jax: 0.10.0
libtpu: 0.0.40
codegen_flags: <defaults>
</compile_context>

<pallas_src>
import jax
import jax.numpy as jnp
from jax import lax
from jax.experimental import pallas as pl
from jax.experimental.pallas import tpu as pltpu

EMBEDDING_SIZE = 10
HIDDEN_SIZE = 8
INPUT_SIZE = 4   # vocab size for the embedding / number of token ids
NUM_CLASS = 4
NUM_LAYERS = 2
BP = 8           # batch padded to one sublane tile

# Weight-slab row offsets (8-row aligned so every static slice stays inside
# whole sublane tiles).  Slab shape: (_SLAB_ROWS, HIDDEN_SIZE) float32.
_ROW_PTAB = 0     # (INPUT_SIZE, H)  pre-projected table: emb @ W_ih0 + (b_ih0 + b_hh0)
_ROW_WHH0 = 8     # (H, H)           layer-0 recurrent weights (pre-transposed)
_ROW_W1CAT = 16   # (2H, H)          [W_ih1; W_hh1] stacked (pre-transposed)
_ROW_B1 = 32      # (1, H)           layer-1 combined bias (b_ih1 + b_hh1)
_ROW_WFC = 40     # (H, C) in cols [:NUM_CLASS]   fc weights (pre-transposed)
_ROW_BFC = 48     # (1, C) in cols [:NUM_CLASS]   fc bias
_SLAB_ROWS = 56


# ----------------------------------------------------------------------------
# Pallas kernel: embedding (one-hot matmul, hoisted out of the recurrence) +
# 2-layer tanh RNN recurrence (fused layer-1 dot) + final Linear (time-major),
# all in VMEM, single grid point, fully unrolled time loop.
# ----------------------------------------------------------------------------
def _make_kernel(T):
    H = HIDDEN_SIZE
    Bp = BP

    def kernel(ids_ref,   # (T*Bp, 1) int32, time-major padded token ids
               w_ref,     # (_SLAB_ROWS, H) float32 packed weights
               out_ref):  # (T*Bp, C) float32 logits, time-major padded
        W = w_ref[...]
        p_tab = W[_ROW_PTAB:_ROW_PTAB + INPUT_SIZE, :]            # (4, H)
        whh0 = W[_ROW_WHH0:_ROW_WHH0 + H, :]                      # (H, H)
        w1cat = W[_ROW_W1CAT:_ROW_W1CAT + 2 * H, :]               # (2H, H)
        b1 = W[_ROW_B1:_ROW_B1 + 1, :]                            # (1, H)
        wfc = W[_ROW_WFC:_ROW_WFC + H, :NUM_CLASS]                # (H, C)
        bfc = W[_ROW_BFC:_ROW_BFC + 1, :NUM_CLASS]                # (1, C)

        # --- Embedding gather + layer-0 input projection, hoisted out of the
        #     recurrence as a single one-hot matmul over all T*Bp tokens.
        #     x0_all[r] = emb[id_r] @ W_ih0 + (b_ih0 + b_hh0)
        ids = ids_ref[...]                                        # (T*Bp, 1)
        iota = lax.broadcasted_iota(jnp.int32, (T * Bp, INPUT_SIZE), 1)
        onehot = (iota == ids).astype(jnp.float32)                # (T*Bp, 4)
        x0_all = jnp.dot(onehot, p_tab,
                         preferred_element_type=jnp.float32)      # (T*Bp, H)

        # --- 2-layer tanh recurrence, fully unrolled (T small & static).
        #     State tiles are (Bp=8, H): every per-step slice of x0_all is a
        #     whole sublane tile (no relayout).  Layer-1 uses a single fused
        #     dot on concat([h0, h1], -1) @ [W_ih1; W_hh1].
        h0 = jnp.zeros((Bp, H), jnp.float32)
        h1 = jnp.zeros((Bp, H), jnp.float32)
        h1_steps = []
        for t in range(T):
            x0_t = x0_all[t * Bp:(t + 1) * Bp, :]                 # (Bp, H) aligned
            h0 = jnp.tanh(
                x0_t + jnp.dot(h0, whh0, preferred_element_type=jnp.float32))
            hcat = jnp.concatenate([h0, h1], axis=-1)             # (Bp, 2H)
            h1 = jnp.tanh(
                jnp.dot(hcat, w1cat, preferred_element_type=jnp.float32) + b1)
            h1_steps.append(h1)

        # --- Final FC, time-major: stack whole (Bp, H) tiles -> (T*Bp, H),
        #     one matmul + one bias add + one store.  The tiny batch-first
        #     reorder of the (T*B, 4) logits happens in the wrapper.
        h1_tm = jnp.concatenate(h1_steps, axis=0)                 # (T*Bp, H)
        logits = jnp.dot(h1_tm, wfc,
                         preferred_element_type=jnp.float32) + bfc
        out_ref[...] = logits.astype(out_ref.dtype)

    return kernel


def rnn_forward_pallas(ids_tm, slab, T):
    """ids_tm: (T*BP, 1) int32 time-major padded ids. Returns (T*BP, C) f32."""
    vmem = pl.BlockSpec(memory_space=pltpu.MemorySpace.VMEM)
    return pl.pallas_call(
        _make_kernel(T),
        out_shape=jax.ShapeDtypeStruct((T * BP, NUM_CLASS), jnp.float32),
        in_specs=[vmem, vmem],
        out_specs=vmem,
    )(ids_tm, slab)


# ----------------------------------------------------------------------------
# Parameter construction / packing + model wrapper
# ----------------------------------------------------------------------------
def init_params(key):
    ks = jax.random.split(key, 10)

    def u(k, shape, bound):
        return jax.random.uniform(k, shape, jnp.float32, -bound, bound)

    emb_table = jax.random.normal(ks[0], (INPUT_SIZE, EMBEDDING_SIZE), jnp.float32)

    s = 1.0 / jnp.sqrt(HIDDEN_SIZE)
    # Stored pre-transposed for right-multiplication: x @ W_ih^T -> x @ wih.
    wih0 = u(ks[1], (EMBEDDING_SIZE, HIDDEN_SIZE), s)
    whh0 = u(ks[2], (HIDDEN_SIZE, HIDDEN_SIZE), s)
    b0 = u(ks[3], (1, HIDDEN_SIZE), s) + u(ks[4], (1, HIDDEN_SIZE), s)  # b_ih + b_hh
    wih1 = u(ks[5], (HIDDEN_SIZE, HIDDEN_SIZE), s)
    whh1 = u(ks[6], (HIDDEN_SIZE, HIDDEN_SIZE), s)
    b1 = u(ks[7], (1, HIDDEN_SIZE), s) + u(ks[8], (1, HIDDEN_SIZE), s)

    sf = 1.0 / jnp.sqrt(HIDDEN_SIZE)
    kf1, kf2 = jax.random.split(ks[9])
    wfc = u(kf1, (HIDDEN_SIZE, NUM_CLASS), sf)
    bfc = u(kf2, (1, NUM_CLASS), sf)

    return {"emb": emb_table, "wih0": wih0, "whh0": whh0, "b0": b0,
            "wih1": wih1, "whh1": whh1, "b1": b1, "wfc": wfc, "bfc": bfc}


def pack_params(params):
    """Pack all weights into one (56, H) f32 slab (built once, outside the
    forward pass).  Layer-0 input weights + bias are folded into the embedding
    table; layer-1 input & recurrent weights are stacked for the fused dot."""
    p_tab = params["emb"] @ params["wih0"] + params["b0"]          # (4, H)
    w1cat = jnp.concatenate([params["wih1"], params["whh1"]], axis=0)  # (2H, H)
    slab = jnp.zeros((_SLAB_ROWS, HIDDEN_SIZE), jnp.float32)
    slab = slab.at[_ROW_PTAB:_ROW_PTAB + INPUT_SIZE, :].set(p_tab)
    slab = slab.at[_ROW_WHH0:_ROW_WHH0 + HIDDEN_SIZE, :].set(params["whh0"])
    slab = slab.at[_ROW_W1CAT:_ROW_W1CAT + 2 * HIDDEN_SIZE, :].set(w1cat)
    slab = slab.at[_ROW_B1:_ROW_B1 + 1, :].set(params["b1"])
    slab = slab.at[_ROW_WFC:_ROW_WFC + HIDDEN_SIZE, :NUM_CLASS].set(params["wfc"])
    slab = slab.at[_ROW_BFC:_ROW_BFC + 1, :NUM_CLASS].set(params["bfc"])
    return slab


@jax.jit
def model_forward(slab, x_ids):
    """x_ids: (B, T) int32 token ids in [0, INPUT_SIZE). Returns (B*T, NUM_CLASS)."""
    B, T = x_ids.shape
    # Pad batch to one sublane tile (padded rows run an independent, discarded
    # recurrence), flatten time-major: row r = t*BP + b.
    ids_p = jnp.zeros((BP, T), jnp.int32).at[:B, :].set(x_ids.astype(jnp.int32))
    ids_tm = jnp.transpose(ids_p).reshape(T * BP, 1)
    out_tm = rnn_forward_pallas(ids_tm, slab, T)                   # (T*BP, C)
    # Tiny (B*T, 4) batch-first reorder in the wrapper (256 bytes of work).
    out = out_tm.reshape(T, BP, NUM_CLASS)[:, :B, :]
    return jnp.transpose(out, (1, 0, 2)).reshape(B * T, NUM_CLASS)


# Pure-JAX reference for validation (matches the PyTorch module semantics).
def model_forward_ref(params, x_ids):
    B, T = x_ids.shape
    x_emb = params["emb"][x_ids]
    h0 = jnp.zeros((B, HIDDEN_SIZE), jnp.float32)
    h1 = jnp.zeros((B, HIDDEN_SIZE), jnp.float32)
    outs = []
    for t in range(T):
        x_t = x_emb[:, t, :]
        h0 = jnp.tanh(x_t @ params["wih0"] + h0 @ params["whh0"] + params["b0"])
        h1 = jnp.tanh(h0 @ params["wih1"] + h1 @ params["whh1"] + params["b1"])
        outs.append(h1 @ params["wfc"] + params["bfc"])
    out = jnp.stack(outs, axis=1)  # (B, T, C)
    return out.reshape(-1, NUM_CLASS)


if __name__ == "__main__":
    key = jax.random.PRNGKey(0)
    pkey, xkey = jax.random.split(key)
    params = init_params(pkey)
    slab = pack_params(params)

    batch, seq = 2, 8
    x_ids = jax.random.randint(xkey, (batch, seq), 0, INPUT_SIZE, dtype=jnp.int32)

    out = model_forward(slab, x_ids)
    out = jax.block_until_ready(out)

    ref = model_forward_ref(params, x_ids)
    assert out.shape == (batch * seq, NUM_CLASS), out.shape
    assert jnp.allclose(out, ref, atol=1e-4, rtol=1e-4), "mismatch vs reference"

    print("KERNEL_OK")
</pallas_src>

<mosaic_0001>
module attributes {stable_mosaic.version = 11 : i64} {
  func.func @kernel(%arg0: memref<64x1xi32, #tpu.memory_space<vmem>>, %arg1: memref<56x8xf32, #tpu.memory_space<vmem>>, %arg2: memref<64x4xf32, #tpu.memory_space<vmem>>) attributes {dimension_semantics = [], scalar_prefetch = 0 : i64, scratch_operands = 0 : i64, tpu.core_type = #tpu.core_type<tc>} {
    %c0 = arith.constant 0 : index
    %c0_0 = arith.constant 0 : index
    %0 = vector.load %arg1[%c0, %c0_0] : memref<56x8xf32, #tpu.memory_space<vmem>>, vector<56x8xf32>
    %1 = vector.extract_strided_slice %0 {offsets = [0, 0], sizes = [4, 8], strides = [1, 1]} : vector<56x8xf32> to vector<4x8xf32>
    %2 = vector.extract_strided_slice %0 {offsets = [8, 0], sizes = [8, 8], strides = [1, 1]} : vector<56x8xf32> to vector<8x8xf32>
    %3 = vector.extract_strided_slice %0 {offsets = [16, 0], sizes = [16, 8], strides = [1, 1]} : vector<56x8xf32> to vector<16x8xf32>
    %4 = vector.extract_strided_slice %0 {offsets = [32, 0], sizes = [1, 8], strides = [1, 1]} : vector<56x8xf32> to vector<1x8xf32>
    %5 = vector.extract_strided_slice %0 {offsets = [40, 0], sizes = [8, 4], strides = [1, 1]} : vector<56x8xf32> to vector<8x4xf32>
    %6 = vector.extract_strided_slice %0 {offsets = [48, 0], sizes = [1, 4], strides = [1, 1]} : vector<56x8xf32> to vector<1x4xf32>
    %c0_1 = arith.constant 0 : index
    %c0_2 = arith.constant 0 : index
    %7 = vector.load %arg0[%c0_1, %c0_2] : memref<64x1xi32, #tpu.memory_space<vmem>>, vector<64x1xi32>
    %8 = tpu.iota {dimensions = array<i32: 1>} : vector<64x4xi32>
    %9 = vector.broadcast %7 : vector<64x1xi32> to vector<64x4xi32>
    %10 = arith.cmpi eq, %8, %9 : vector<64x4xi32>
    %11 = arith.extui %10 : vector<64x4xi1> to vector<64x4xi32>
    %12 = arith.sitofp %11 : vector<64x4xi32> to vector<64x4xf32>
    %cst = arith.constant dense<0.000000e+00> : vector<64x8xf32>
    %13 = tpu.matmul %12, %1, %cst {dimension_numbers = #tpu.dot_dimension_numbers<[1], [0], [0], [1], [0, 0, 1, 1], [], []>} : vector<64x4xf32>, vector<4x8xf32>, vector<64x8xf32> -> vector<64x8xf32>
    %cst_3 = arith.constant 0.000000e+00 : f32
    %14 = vector.broadcast %cst_3 : f32 to vector<8x8xf32>
    %cst_4 = arith.constant 0.000000e+00 : f32
    %15 = vector.broadcast %cst_4 : f32 to vector<8x8xf32>
    %16 = vector.extract_strided_slice %13 {offsets = [0, 0], sizes = [8, 8], strides = [1, 1]} : vector<64x8xf32> to vector<8x8xf32>
    %cst_5 = arith.constant dense<0.000000e+00> : vector<8x8xf32>
    %17 = tpu.matmul %14, %2, %cst_5 {dimension_numbers = #tpu.dot_dimension_numbers<[1], [0], [0], [1], [0, 0, 1, 1], [], []>} : vector<8x8xf32>, vector<8x8xf32>, vector<8x8xf32> -> vector<8x8xf32>
    %18 = arith.addf %16, %17 : vector<8x8xf32>
    %19 = math.tanh %18 : vector<8x8xf32>
    %20 = tpu.concatenate %19, %15 in 1 : vector<8x8xf32>, vector<8x8xf32> -> vector<8x16xf32>
    %cst_6 = arith.constant dense<0.000000e+00> : vector<8x8xf32>
    %21 = tpu.matmul %20, %3, %cst_6 {dimension_numbers = #tpu.dot_dimension_numbers<[1], [0], [0], [1], [0, 0, 1, 1], [], []>} : vector<8x16xf32>, vector<16x8xf32>, vector<8x8xf32> -> vector<8x8xf32>
    %22 = vector.broadcast %4 : vector<1x8xf32> to vector<8x8xf32>
    %23 = arith.addf %21, %22 : vector<8x8xf32>
    %24 = math.tanh %23 : vector<8x8xf32>
    %25 = vector.extract_strided_slice %13 {offsets = [8, 0], sizes = [8, 8], strides = [1, 1]} : vector<64x8xf32> to vector<8x8xf32>
    %cst_7 = arith.constant dense<0.000000e+00> : vector<8x8xf32>
    %26 = tpu.matmul %19, %2, %cst_7 {dimension_numbers = #tpu.dot_dimension_numbers<[1], [0], [0], [1], [0, 0, 1, 1], [], []>} : vector<8x8xf32>, vector<8x8xf32>, vector<8x8xf32> -> vector<8x8xf32>
    %27 = arith.addf %25, %26 : vector<8x8xf32>
    %28 = math.tanh %27 : vector<8x8xf32>
    %29 = tpu.concatenate %28, %24 in 1 : vector<8x8xf32>, vector<8x8xf32> -> vector<8x16xf32>
    %cst_8 = arith.constant dense<0.000000e+00> : vector<8x8xf32>
    %30 = tpu.matmul %29, %3, %cst_8 {dimension_numbers = #tpu.dot_dimension_numbers<[1], [0], [0], [1], [0, 0, 1, 1], [], []>} : vector<8x16xf32>, vector<16x8xf32>, vector<8x8xf32> -> vector<8x8xf32>
    %31 = vector.broadcast %4 : vector<1x8xf32> to vector<8x8xf32>
    %32 = arith.addf %30, %31 : vector<8x8xf32>
    %33 = math.tanh %32 : vector<8x8xf32>
    %34 = vector.extract_strided_slice %13 {offsets = [16, 0], sizes = [8, 8], strides = [1, 1]} : vector<64x8xf32> to vector<8x8xf32>
    %cst_9 = arith.constant dense<0.000000e+00> : vector<8x8xf32>
    %35 = tpu.matmul %28, %2, %cst_9 {dimension_numbers = #tpu.dot_dimension_numbers<[1], [0], [0], [1], [0, 0, 1, 1], [], []>} : vector<8x8xf32>, vector<8x8xf32>, vector<8x8xf32> -> vector<8x8xf32>
    %36 = arith.addf %34, %35 : vector<8x8xf32>
    %37 = math.tanh %36 : vector<8x8xf32>
    %38 = tpu.concatenate %37, %33 in 1 : vector<8x8xf32>, vector<8x8xf32> -> vector<8x16xf32>
    %cst_10 = arith.constant dense<0.000000e+00> : vector<8x8xf32>
    %39 = tpu.matmul %38, %3, %cst_10 {dimension_numbers = #tpu.dot_dimension_numbers<[1], [0], [0], [1], [0, 0, 1, 1], [], []>} : vector<8x16xf32>, vector<16x8xf32>, vector<8x8xf32> -> vector<8x8xf32>
    %40 = vector.broadcast %4 : vector<1x8xf32> to vector<8x8xf32>
    %41 = arith.addf %39, %40 : vector<8x8xf32>
    %42 = math.tanh %41 : vector<8x8xf32>
    %43 = vector.extract_strided_slice %13 {offsets = [24, 0], sizes = [8, 8], strides = [1, 1]} : vector<64x8xf32> to vector<8x8xf32>
    %cst_11 = arith.constant dense<0.000000e+00> : vector<8x8xf32>
    %44 = tpu.matmul %37, %2, %cst_11 {dimension_numbers = #tpu.dot_dimension_numbers<[1], [0], [0], [1], [0, 0, 1, 1], [], []>} : vector<8x8xf32>, vector<8x8xf32>, vector<8x8xf32> -> vector<8x8xf32>
    %45 = arith.addf %43, %44 : vector<8x8xf32>
    %46 = math.tanh %45 : vector<8x8xf32>
    %47 = tpu.concatenate %46, %42 in 1 : vector<8x8xf32>, vector<8x8xf32> -> vector<8x16xf32>
    %cst_12 = arith.constant dense<0.000000e+00> : vector<8x8xf32>
    %48 = tpu.matmul %47, %3, %cst_12 {dimension_numbers = #tpu.dot_dimension_numbers<[1], [0], [0], [1], [0, 0, 1, 1], [], []>} : vector<8x16xf32>, vector<16x8xf32>, vector<8x8xf32> -> vector<8x8xf32>
    %49 = vector.broadcast %4 : vector<1x8xf32> to vector<8x8xf32>
    %50 = arith.addf %48, %49 : vector<8x8xf32>
    %51 = math.tanh %50 : vector<8x8xf32>
    %52 = vector.extract_strided_slice %13 {offsets = [32, 0], sizes = [8, 8], strides = [1, 1]} : vector<64x8xf32> to vector<8x8xf32>
    %cst_13 = arith.constant dense<0.000000e+00> : vector<8x8xf32>
    %53 = tpu.matmul %46, %2, %cst_13 {dimension_numbers = #tpu.dot_dimension_numbers<[1], [0], [0], [1], [0, 0, 1, 1], [], []>} : vector<8x8xf32>, vector<8x8xf32>, vector<8x8xf32> -> vector<8x8xf32>
    %54 = arith.addf %52, %53 : vector<8x8xf32>
    %55 = math.tanh %54 : vector<8x8xf32>
    %56 = tpu.concatenate %55, %51 in 1 : vector<8x8xf32>, vector<8x8xf32> -> vector<8x16xf32>
    %cst_14 = arith.constant dense<0.000000e+00> : vector<8x8xf32>
    %57 = tpu.matmul %56, %3, %cst_14 {dimension_numbers = #tpu.dot_dimension_numbers<[1], [0], [0], [1], [0, 0, 1, 1], [], []>} : vector<8x16xf32>, vector<16x8xf32>, vector<8x8xf32> -> vector<8x8xf32>
    %58 = vector.broadcast %4 : vector<1x8xf32> to vector<8x8xf32>
    %59 = arith.addf %57, %58 : vector<8x8xf32>
    %60 = math.tanh %59 : vector<8x8xf32>
    %61 = vector.extract_strided_slice %13 {offsets = [40, 0], sizes = [8, 8], strides = [1, 1]} : vector<64x8xf32> to vector<8x8xf32>
    %cst_15 = arith.constant dense<0.000000e+00> : vector<8x8xf32>
    %62 = tpu.matmul %55, %2, %cst_15 {dimension_numbers = #tpu.dot_dimension_numbers<[1], [0], [0], [1], [0, 0, 1, 1], [], []>} : vector<8x8xf32>, vector<8x8xf32>, vector<8x8xf32> -> vector<8x8xf32>
    %63 = arith.addf %61, %62 : vector<8x8xf32>
    %64 = math.tanh %63 : vector<8x8xf32>
    %65 = tpu.concatenate %64, %60 in 1 : vector<8x8xf32>, vector<8x8xf32> -> vector<8x16xf32>
    %cst_16 = arith.constant dense<0.000000e+00> : vector<8x8xf32>
    %66 = tpu.matmul %65, %3, %cst_16 {dimension_numbers = #tpu.dot_dimension_numbers<[1], [0], [0], [1], [0, 0, 1, 1], [], []>} : vector<8x16xf32>, vector<16x8xf32>, vector<8x8xf32> -> vector<8x8xf32>
    %67 = vector.broadcast %4 : vector<1x8xf32> to vector<8x8xf32>
    %68 = arith.addf %66, %67 : vector<8x8xf32>
    %69 = math.tanh %68 : vector<8x8xf32>
    %70 = vector.extract_strided_slice %13 {offsets = [48, 0], sizes = [8, 8], strides = [1, 1]} : vector<64x8xf32> to vector<8x8xf32>
    %cst_17 = arith.constant dense<0.000000e+00> : vector<8x8xf32>
    %71 = tpu.matmul %64, %2, %cst_17 {dimension_numbers = #tpu.dot_dimension_numbers<[1], [0], [0], [1], [0, 0, 1, 1], [], []>} : vector<8x8xf32>, vector<8x8xf32>, vector<8x8xf32> -> vector<8x8xf32>
    %72 = arith.addf %70, %71 : vector<8x8xf32>
    %73 = math.tanh %72 : vector<8x8xf32>
    %74 = tpu.concatenate %73, %69 in 1 : vector<8x8xf32>, vector<8x8xf32> -> vector<8x16xf32>
    %cst_18 = arith.constant dense<0.000000e+00> : vector<8x8xf32>
    %75 = tpu.matmul %74, %3, %cst_18 {dimension_numbers = #tpu.dot_dimension_numbers<[1], [0], [0], [1], [0, 0, 1, 1], [], []>} : vector<8x16xf32>, vector<16x8xf32>, vector<8x8xf32> -> vector<8x8xf32>
    %76 = vector.broadcast %4 : vector<1x8xf32> to vector<8x8xf32>
    %77 = arith.addf %75, %76 : vector<8x8xf32>
    %78 = math.tanh %77 : vector<8x8xf32>
    %79 = vector.extract_strided_slice %13 {offsets = [56, 0], sizes = [8, 8], strides = [1, 1]} : vector<64x8xf32> to vector<8x8xf32>
    %cst_19 = arith.constant dense<0.000000e+00> : vector<8x8xf32>
    %80 = tpu.matmul %73, %2, %cst_19 {dimension_numbers = #tpu.dot_dimension_numbers<[1], [0], [0], [1], [0, 0, 1, 1], [], []>} : vector<8x8xf32>, vector<8x8xf32>, vector<8x8xf32> -> vector<8x8xf32>
    %81 = arith.addf %79, %80 : vector<8x8xf32>
    %82 = math.tanh %81 : vector<8x8xf32>
    %83 = tpu.concatenate %82, %78 in 1 : vector<8x8xf32>, vector<8x8xf32> -> vector<8x16xf32>
    %cst_20 = arith.constant dense<0.000000e+00> : vector<8x8xf32>
    %84 = tpu.matmul %83, %3, %cst_20 {dimension_numbers = #tpu.dot_dimension_numbers<[1], [0], [0], [1], [0, 0, 1, 1], [], []>} : vector<8x16xf32>, vector<16x8xf32>, vector<8x8xf32> -> vector<8x8xf32>
    %85 = vector.broadcast %4 : vector<1x8xf32> to vector<8x8xf32>
    %86 = arith.addf %84, %85 : vector<8x8xf32>
    %87 = math.tanh %86 : vector<8x8xf32>
    %88 = tpu.concatenate %24, %33, %42, %51, %60, %69, %78, %87 in 0 : vector<8x8xf32>, vector<8x8xf32>, vector<8x8xf32>, vector<8x8xf32>, vector<8x8xf32>, vector<8x8xf32>, vector<8x8xf32>, vector<8x8xf32> -> vector<64x8xf32>
    %cst_21 = arith.constant dense<0.000000e+00> : vector<64x4xf32>
    %89 = tpu.matmul %88, %5, %cst_21 {dimension_numbers = #tpu.dot_dimension_numbers<[1], [0], [0], [1], [0, 0, 1, 1], [], []>} : vector<64x8xf32>, vector<8x4xf32>, vector<64x4xf32> -> vector<64x4xf32>
    %90 = vector.broadcast %6 : vector<1x4xf32> to vector<64x4xf32>
    %91 = arith.addf %89, %90 : vector<64x4xf32>
    %c0_22 = arith.constant 0 : index
    %c0_23 = arith.constant 0 : index
    %92 = vector.load %arg2[%c0_22, %c0_23] : memref<64x4xf32, #tpu.memory_space<vmem>>, vector<64x4xf32>
    tpu.vector_store %arg2[%c0_22, %c0_23], %91 {strides = array<i32>} : memref<64x4xf32, #tpu.memory_space<vmem>>, vector<64x4xf32>,
    return
  }
}

</mosaic_0001>

<llo_original>
// kernel: model_forward.1
$region0: #{model_forward.1}
  #allocation0 [shape = 'u32[]', space=smem, size = 0x4, offset = 0x4, fixed_abs, tag = 'smem constant byte address 0x4 - core index']
  #allocation1 [shape = 'u32[144,128]{1,0:T(1,128)}', space=vmem, size = 0x12000, scoped, tag = 'internal scratch']
  %s0 = inlined_call_operand.vmem [shape: s32[64,1], index: 0, kind: input, shape index: {}]
  %s1 = inlined_call_operand.vmem [shape: f32[56,8], index: 1, kind: input, shape index: {}]
  %s2 = inlined_call_operand.vmem [shape: f32[64,4], index: 2, kind: output, shape index: {}]
  %s3 = sld [smem:[#allocation0]]
  $region18: #{model_forward.1} parent=0
    _
  %s5 = ssub.s32 1, %s3
  %s6 = scalar_select 0, %s5, %s3
  // Predicated region
  $region2: #{model_forward.1} parent=0 // pred_check
    _
  $region3: #{model_forward.1} parent=0 // pred_check_branch
    %8 = sbr.rel (0) target = $region5
  $region4: #{model_forward.1} parent=0 // pred_region
    _
  $region5: #{model_forward.1} parent=0 // pred_fallthru
    _
  // Predicated region
  $region6: #{model_forward.1} parent=0 // pred_check
    _
  $region7: #{model_forward.1} parent=0 // pred_check_branch
    %10 = sbr.rel (0) target = $region9
  $region8: #{model_forward.1} parent=0 // pred_region
    _
  $region9: #{model_forward.1} parent=0 // pred_fallthru
    _
  %v11 = vld [vmem:[%s1] sm:$0xff]
  %v12 = vld [vmem:[%s1 + $0x8] sm:$0xff]
  %v13 = vld [vmem:[%s1 + $0x10] sm:$0xff]
  %v14 = vld [vmem:[%s1 + $0x18] sm:$0xff]
  %v15 = vld [vmem:[%s1 + $0x20] sm:$0xff]
  %v16 = vld [vmem:[%s1 + $0x28] sm:$0xff]
  %v17 = vld [vmem:[%s1 + $0x30] sm:$0xff]
  %v18 = vld [vmem:[%s0] sm:$0xff]
  %v19 = vld [vmem:[%s0 + $0x8] sm:$0xff]
  %v20 = vld [vmem:[%s0 + $0x10] sm:$0xff]
  %v21 = vld [vmem:[%s0 + $0x18] sm:$0xff]
  %v22 = vld [vmem:[%s0 + $0x20] sm:$0xff]
  %v23 = vld [vmem:[%s0 + $0x28] sm:$0xff]
  %v24 = vld [vmem:[%s0 + $0x30] sm:$0xff]
  %v25 = vld [vmem:[%s0 + $0x38] sm:$0xff]
  %v26 = vlaneseq
  %v27 = vand.u32 %v26, 127
  %28 = vset.pattern.permute.xlu0 0
  %29 = vperm.xlu0 %28, %v18
  %v30 = vpop.permute.xlu0 %29
  %31 = vset.pattern.permute.xlu0 0
  %32 = vperm.xlu0 %31, %v19
  %v33 = vpop.permute.xlu0 %32
  %34 = vset.pattern.permute.xlu0 0
  %35 = vperm.xlu0 %34, %v20
  %v36 = vpop.permute.xlu0 %35
  %37 = vset.pattern.permute.xlu0 0
  %38 = vperm.xlu0 %37, %v21
  %v39 = vpop.permute.xlu0 %38
  %40 = vset.pattern.permute.xlu0 0
  %41 = vperm.xlu0 %40, %v22
  %v42 = vpop.permute.xlu0 %41
  %43 = vset.pattern.permute.xlu0 0
  %44 = vperm.xlu0 %43, %v23
  %v45 = vpop.permute.xlu0 %44
  %46 = vset.pattern.permute.xlu0 0
  %47 = vperm.xlu0 %46, %v24
  %v48 = vpop.permute.xlu0 %47
  %49 = vset.pattern.permute.xlu0 0
  %50 = vperm.xlu0 %49, %v25
  %v51 = vpop.permute.xlu0 %50
  %vm52 = vcmp.eq.s32.totalorder %v27, %v30
  %vm53 = vcmp.eq.s32.totalorder %v27, %v33
  %vm54 = vcmp.eq.s32.totalorder %v27, %v36
  %vm55 = vcmp.eq.s32.totalorder %v27, %v39
  %vm56 = vcmp.eq.s32.totalorder %v27, %v42
  %vm57 = vcmp.eq.s32.totalorder %v27, %v45
  %vm58 = vcmp.eq.s32.totalorder %v27, %v48
  %vm59 = vcmp.eq.s32.totalorder %v27, %v51
  %v60 = vsel %vm52, 1, 0
  %v61 = vsel %vm53, 1, 0
  %v62 = vsel %vm54, 1, 0
  %v63 = vsel %vm55, 1, 0
  %v64 = vsel %vm56, 1, 0
  %v65 = vsel %vm57, 1, 0
  %v66 = vsel %vm58, 1, 0
  %v67 = vsel %vm59, 1, 0
  %v68 = vcvt.s32.f32 %v60
  %v69 = vcvt.s32.f32 %v61
  %v70 = vcvt.s32.f32 %v62
  %v71 = vcvt.s32.f32 %v63
  %v72 = vcvt.s32.f32 %v64
  %v73 = vcvt.s32.f32 %v65
  %v74 = vcvt.s32.f32 %v66
  %v75 = vcvt.s32.f32 %v67
  %vm76 = vcmask 31744
  %v78 = vsel %vm76, %v68, 0
  %v81 = vsel %vm76, %v69, 0
  %v84 = vsel %vm76, %v70, 0
  %v87 = vsel %vm76, %v71, 0
  %v90 = vsel %vm76, %v72, 0
  %v93 = vsel %vm76, %v73, 0
  %v96 = vsel %vm76, %v74, 0
  %v99 = vsel %vm76, %v75, 0
  %vm101 = vcmask 1043456
  %v103 = vsel %vm101, %v11, 0
  %105 = vmatprep.subr.mxu0 0.0
  %106 = vmatpush1.msra.mxu0 0.0
  %107 = vmatprep.subr.mxu0 0.0
  %108 = vmatpush1.msra.mxu0 0.0
  %109 = vmatprep.subr.mxu0 0.0
  %110 = vmatpush1.msra.mxu0 0.0
  %111 = vmatprep.subr.mxu0 0.0
  %112 = vmatpush1.msra.mxu0 0.0
  %113 = vmatprep.subr.mxu0 0.0
  %114 = vmatpush1.msra.mxu0 0.0
  %115 = vmatprep.subr.mxu0 0.0
  %116 = vmatpush1.msra.mxu0 0.0
  %117 = vmatprep.subr.mxu0 0.0
  %118 = vmatpush1.msra.mxu0 0.0
  %119 = vmatprep.subr.mxu0 0.0
  %120 = vmatpush1.msra.mxu0 0.0
  %121 = vmatprep.subr.mxu0 0.0
  %122 = vmatpush1.msra.mxu0 0.0
  %123 = vmatprep.subr.mxu0 0.0
  %124 = vmatpush1.msra.mxu0 0.0
  %125 = vmatprep.subr.mxu0 0.0
  %126 = vmatpush1.msra.mxu0 0.0
  %127 = vmatprep.subr.mxu0 0.0
  %128 = vmatpush1.msra.mxu0 0.0
  %129 = vmatprep.subr.mxu0 0.0
  %130 = vmatpush1.msra.mxu0 0.0
  %131 = vmatprep.subr.mxu0 0.0
  %132 = vmatpush1.msra.mxu0 0.0
  %133 = vmatprep.subr.mxu0 0.0
  %134 = vmatpush1.msra.mxu0 0.0
  %135 = vmatprep.subr.mxu0 0.0
  %136 = vmatpush1.msra.mxu0 %v103
  %137 = vmatprep.subr.mxu0 0.0
  %138 = vmatpush2.msra.mxu0 0.0
  %139 = vmatprep.subr.mxu0 0.0
  %140 = vmatpush2.msra.mxu0 0.0
  %141 = vmatprep.subr.mxu0 0.0
  %142 = vmatpush2.msra.mxu0 0.0
  %143 = vmatprep.subr.mxu0 0.0
  %144 = vmatpush2.msra.mxu0 0.0
  %145 = vmatprep.subr.mxu0 0.0
  %146 = vmatpush2.msra.mxu0 0.0
  %147 = vmatprep.subr.mxu0 0.0
  %148 = vmatpush2.msra.mxu0 0.0
  %149 = vmatprep.subr.mxu0 0.0
  %150 = vmatpush2.msra.mxu0 0.0
  %151 = vmatprep.subr.mxu0 0.0
  %152 = vmatpush2.msra.mxu0 0.0
  %153 = vmatprep.subr.mxu0 0.0
  %154 = vmatpush2.msra.mxu0 0.0
  %155 = vmatprep.subr.mxu0 0.0
  %156 = vmatpush2.msra.mxu0 0.0
  %157 = vmatprep.subr.mxu0 0.0
  %158 = vmatpush2.msra.mxu0 0.0
  %159 = vmatprep.subr.mxu0 0.0
  %160 = vmatpush2.msra.mxu0 0.0
  %161 = vmatprep.subr.mxu0 0.0
  %162 = vmatpush2.msra.mxu0 0.0
  %163 = vmatprep.subr.mxu0 0.0
  %164 = vmatpush2.msra.mxu0 0.0
  %165 = vmatprep.subr.mxu0 0.0
  %166 = vmatpush2.msra.mxu0 0.0
  %167 = vmatprep.subr.mxu0 0.0
  %168 = vmatpush2.msra.mxu0 0.0
  %169 = vmatprep.mubr.f32.mxu0 0.0
  %170 = vmatmul.mubr.f32.gmra.mxu0 %v78
  %v171 = vpop.f32.mrf.mxu0
  %v172 = vadd.f32 0.0, %v171
  %v173 = vpop.f32.mrf.mxu0
  %174 = vmatprep.mubr.f32.mxu0 0.0
  %175 = vmatmul.mubr.f32.gmra.mxu0 %v81
  %v176 = vpop.f32.mrf.mxu0
  %v177 = vadd.f32 0.0, %v176
  %v178 = vpop.f32.mrf.mxu0
  %179 = vmatprep.mubr.f32.mxu0 0.0
  %180 = vmatmul.mubr.f32.gmra.mxu0 %v84
  %v181 = vpop.f32.mrf.mxu0
  %v182 = vadd.f32 0.0, %v181
  %v183 = vpop.f32.mrf.mxu0
  %184 = vmatprep.mubr.f32.mxu0 0.0
  %185 = vmatmul.mubr.f32.gmra.mxu0 %v87
  %v186 = vpop.f32.mrf.mxu0
  %v187 = vadd.f32 0.0, %v186
  %v188 = vpop.f32.mrf.mxu0
  %189 = vmatprep.mubr.f32.mxu0 0.0
  %190 = vmatmul.mubr.f32.gmra.mxu0 %v90
  %v191 = vpop.f32.mrf.mxu0
  %v192 = vadd.f32 0.0, %v191
  %v193 = vpop.f32.mrf.mxu0
  %194 = vmatprep.mubr.f32.mxu0 0.0
  %195 = vmatmul.mubr.f32.gmra.mxu0 %v93
  %v196 = vpop.f32.mrf.mxu0
  %v197 = vadd.f32 0.0, %v196
  %v198 = vpop.f32.mrf.mxu0
  %199 = vmatprep.mubr.f32.mxu0 0.0
  %200 = vmatmul.mubr.f32.gmra.mxu0 %v96
  %v201 = vpop.f32.mrf.mxu0
  %v202 = vadd.f32 0.0, %v201
  %v203 = vpop.f32.mrf.mxu0
  %204 = vmatprep.mubr.f32.mxu0 0.0
  %205 = vmatmul.mubr.f32.gmra.mxu0 %v99
  %v206 = vpop.f32.mrf.mxu0
  %v207 = vadd.f32 0.0, %v206
  %v208 = vpop.f32.mrf.mxu0
  %209 = vdwg.mxu0
  %vm210 = vcmask 64512
  %v212 = vsel %vm210, 0.0, 0
  %214 = vmatprep.subr.mxu0 0.0
  %215 = vmatpush1.msra.mxu0 0.0
  %216 = vmatprep.subr.mxu0 0.0
  %217 = vmatpush1.msra.mxu0 0.0
  %218 = vmatprep.subr.mxu0 0.0
  %219 = vmatpush1.msra.mxu0 0.0
  %220 = vmatprep.subr.mxu0 0.0
  %221 = vmatpush1.msra.mxu0 0.0
  %222 = vmatprep.subr.mxu0 0.0
  %223 = vmatpush1.msra.mxu0 0.0
  %224 = vmatprep.subr.mxu0 0.0
  %225 = vmatpush1.msra.mxu0 0.0
  %226 = vmatprep.subr.mxu0 0.0
  %227 = vmatpush1.msra.mxu0 0.0
  %228 = vmatprep.subr.mxu0 0.0
  %229 = vmatpush1.msra.mxu0 0.0
  %230 = vmatprep.subr.mxu0 0.0
  %231 = vmatpush1.msra.mxu0 0.0
  %232 = vmatprep.subr.mxu0 0.0
  %233 = vmatpush1.msra.mxu0 0.0
  %234 = vmatprep.subr.mxu0 0.0
  %235 = vmatpush1.msra.mxu0 0.0
  %236 = vmatprep.subr.mxu0 0.0
  %237 = vmatpush1.msra.mxu0 0.0
  %238 = vmatprep.subr.mxu0 0.0
  %239 = vmatpush1.msra.mxu0 0.0
  %240 = vmatprep.subr.mxu0 0.0
  %241 = vmatpush1.msra.mxu0 0.0
  %242 = vmatprep.subr.mxu0 0.0
  %243 = vmatpush1.msra.mxu0 0.0
  %244 = vmatprep.subr.mxu0 0.0
  %245 = vmatpush1.msra.mxu0 %v12
  %246 = vmatprep.subr.mxu0 0.0
  %247 = vmatpush2.msra.mxu0 0.0
  %248 = vmatprep.subr.mxu0 0.0
  %249 = vmatpush2.msra.mxu0 0.0
  %250 = vmatprep.subr.mxu0 0.0
  %251 = vmatpush2.msra.mxu0 0.0
  %252 = vmatprep.subr.mxu0 0.0
  %253 = vmatpush2.msra.mxu0 0.0
  %254 = vmatprep.subr.mxu0 0.0
  %255 = vmatpush2.msra.mxu0 0.0
  %256 = vmatprep.subr.mxu0 0.0
  %257 = vmatpush2.msra.mxu0 0.0
  %258 = vmatprep.subr.mxu0 0.0
  %259 = vmatpush2.msra.mxu0 0.0
  %260 = vmatprep.subr.mxu0 0.0
  %261 = vmatpush2.msra.mxu0 0.0
  %262 = vmatprep.subr.mxu0 0.0
  %263 = vmatpush2.msra.mxu0 0.0
  %264 = vmatprep.subr.mxu0 0.0
  %265 = vmatpush2.msra.mxu0 0.0
  %266 = vmatprep.subr.mxu0 0.0
  %267 = vmatpush2.msra.mxu0 0.0
  %268 = vmatprep.subr.mxu0 0.0
  %269 = vmatpush2.msra.mxu0 0.0
  %270 = vmatprep.subr.mxu0 0.0
  %271 = vmatpush2.msra.mxu0 0.0
  %272 = vmatprep.subr.mxu0 0.0
  %273 = vmatpush2.msra.mxu0 0.0
  %274 = vmatprep.subr.mxu0 0.0
  %275 = vmatpush2.msra.mxu0 0.0
  %276 = vmatprep.subr.mxu0 0.0
  %277 = vmatpush2.msra.mxu0 0.0
  %278 = vmatprep.mubr.f32.mxu0 0.0
  %279 = vmatmul.mubr.f32.gmra.mxu0 %v212
  %v280 = vpop.f32.mrf.mxu0
  %v281 = vadd.f32 0.0, %v280
  %v282 = vpop.f32.mrf.mxu0
  %283 = vdwg.mxu0
  %v284 = vadd.f32 %v172, %v281
  %v285 = vtanh.pop %v284
  %v286 = vsel %vm210, %v285, 0.0
  %v287 = vlaneseq
  %v288 = vshrl.u32 %v287, 7
  %v289 = vsub.s32 0, %v288
  %v290 = vrot.slane %v15, %v289
  %vm291 = vcmask 130048
  %v293 = vsel %vm291, %v286, 0
  %295 = vmatprep.subr.mxu0 0.0
  %296 = vmatpush1.msra.mxu0 0.0
  %297 = vmatprep.subr.mxu0 0.0
  %298 = vmatpush1.msra.mxu0 0.0
  %299 = vmatprep.subr.mxu0 0.0
  %300 = vmatpush1.msra.mxu0 0.0
  %301 = vmatprep.subr.mxu0 0.0
  %302 = vmatpush1.msra.mxu0 0.0
  %303 = vmatprep.subr.mxu0 0.0
  %304 = vmatpush1.msra.mxu0 0.0
  %305 = vmatprep.subr.mxu0 0.0
  %306 = vmatpush1.msra.mxu0 0.0
  %307 = vmatprep.subr.mxu0 0.0
  %308 = vmatpush1.msra.mxu0 0.0
  %309 = vmatprep.subr.mxu0 0.0
  %310 = vmatpush1.msra.mxu0 0.0
  %311 = vmatprep.subr.mxu0 0.0
  %312 = vmatpush1.msra.mxu0 0.0
  %313 = vmatprep.subr.mxu0 0.0
  %314 = vmatpush1.msra.mxu0 0.0
  %315 = vmatprep.subr.mxu0 0.0
  %316 = vmatpush1.msra.mxu0 0.0
  %317 = vmatprep.subr.mxu0 0.0
  %318 = vmatpush1.msra.mxu0 0.0
  %319 = vmatprep.subr.mxu0 0.0
  %320 = vmatpush1.msra.mxu0 0.0
  %321 = vmatprep.subr.mxu0 0.0
  %322 = vmatpush1.msra.mxu0 0.0
  %323 = vmatprep.subr.mxu0 0.0
  %324 = vmatpush1.msra.mxu0 %v14
  %325 = vmatprep.subr.mxu0 0.0
  %326 = vmatpush1.msra.mxu0 %v13
  %327 = vmatprep.subr.mxu0 0.0
  %328 = vmatpush2.msra.mxu0 0.0
  %329 = vmatprep.subr.mxu0 0.0
  %330 = vmatpush2.msra.mxu0 0.0
  %331 = vmatprep.subr.mxu0 0.0
  %332 = vmatpush2.msra.mxu0 0.0
  %333 = vmatprep.subr.mxu0 0.0
  %334 = vmatpush2.msra.mxu0 0.0
  %335 = vmatprep.subr.mxu0 0.0
  %336 = vmatpush2.msra.mxu0 0.0
  %337 = vmatprep.subr.mxu0 0.0
  %338 = vmatpush2.msra.mxu0 0.0
  %339 = vmatprep.subr.mxu0 0.0
  %340 = vmatpush2.msra.mxu0 0.0
  %341 = vmatprep.subr.mxu0 0.0
  %342 = vmatpush2.msra.mxu0 0.0
  %343 = vmatprep.subr.mxu0 0.0
  %344 = vmatpush2.msra.mxu0 0.0
  %345 = vmatprep.subr.mxu0 0.0
  %346 = vmatpush2.msra.mxu0 0.0
  %347 = vmatprep.subr.mxu0 0.0
  %348 = vmatpush2.msra.mxu0 0.0
  %349 = vmatprep.subr.mxu0 0.0
  %350 = vmatpush2.msra.mxu0 0.0
  %351 = vmatprep.subr.mxu0 0.0
  %352 = vmatpush2.msra.mxu0 0.0
  %353 = vmatprep.subr.mxu0 0.0
  %354 = vmatpush2.msra.mxu0 0.0
  %355 = vmatprep.subr.mxu0 0.0
  %356 = vmatpush2.msra.mxu0 0.0
  %357 = vmatprep.subr.mxu0 0.0
  %358 = vmatpush2.msra.mxu0 0.0
  %359 = vmatprep.mubr.f32.mxu0 0.0
  %360 = vmatmul.mubr.f32.gmra.mxu0 %v293
  %v361 = vpop.f32.mrf.mxu0
  %v362 = vadd.f32 %v290, %v361
  %v363 = vpop.f32.mrf.mxu0
  %364 = vdwg.mxu0
  %v365 = vtanh.pop %v362
  %v367 = vsel %vm210, %v285, 0
  %369 = vmatprep.subr.mxu0 0.0
  %370 = vmatpush1.msra.mxu0 0.0
  %371 = vmatprep.subr.mxu0 0.0
  %372 = vmatpush1.msra.mxu0 0.0
  %373 = vmatprep.subr.mxu0 0.0
  %374 = vmatpush1.msra.mxu0 0.0
  %375 = vmatprep.subr.mxu0 0.0
  %376 = vmatpush1.msra.mxu0 0.0
  %377 = vmatprep.subr.mxu0 0.0
  %378 = vmatpush1.msra.mxu0 0.0
  %379 = vmatprep.subr.mxu0 0.0
  %380 = vmatpush1.msra.mxu0 0.0
  %381 = vmatprep.subr.mxu0 0.0
  %382 = vmatpush1.msra.mxu0 0.0
  %383 = vmatprep.subr.mxu0 0.0
  %384 = vmatpush1.msra.mxu0 0.0
  %385 = vmatprep.subr.mxu0 0.0
  %386 = vmatpush1.msra.mxu0 0.0
  %387 = vmatprep.subr.mxu0 0.0
  %388 = vmatpush1.msra.mxu0 0.0
  %389 = vmatprep.subr.mxu0 0.0
  %390 = vmatpush1.msra.mxu0 0.0
  %391 = vmatprep.subr.mxu0 0.0
  %392 = vmatpush1.msra.mxu0 0.0
  %393 = vmatprep.subr.mxu0 0.0
  %394 = vmatpush1.msra.mxu0 0.0
  %395 = vmatprep.subr.mxu0 0.0
  %396 = vmatpush1.msra.mxu0 0.0
  %397 = vmatprep.subr.mxu0 0.0
  %398 = vmatpush1.msra.mxu0 0.0
  %399 = vmatprep.subr.mxu0 0.0
  %400 = vmatpush1.msra.mxu0 %v12
  %401 = vmatprep.subr.mxu0 0.0
  %402 = vmatpush2.msra.mxu0 0.0
  %403 = vmatprep.subr.mxu0 0.0
  %404 = vmatpush2.msra.mxu0 0.0
  %405 = vmatprep.subr.mxu0 0.0
  %406 = vmatpush2.msra.mxu0 0.0
  %407 = vmatprep.subr.mxu0 0.0
  %408 = vmatpush2.msra.mxu0 0.0
  %409 = vmatprep.subr.mxu0 0.0
  %410 = vmatpush2.msra.mxu0 0.0
  %411 = vmatprep.subr.mxu0 0.0
  %412 = vmatpush2.msra.mxu0 0.0
  %413 = vmatprep.subr.mxu0 0.0
  %414 = vmatpush2.msra.mxu0 0.0
  %415 = vmatprep.subr.mxu0 0.0
  %416 = vmatpush2.msra.mxu0 0.0
  %417 = vmatprep.subr.mxu0 0.0
  %418 = vmatpush2.msra.mxu0 0.0
  %419 = vmatprep.subr.mxu0 0.0
  %420 = vmatpush2.msra.mxu0 0.0
  %421 = vmatprep.subr.mxu0 0.0
  %422 = vmatpush2.msra.mxu0 0.0
  %423 = vmatprep.subr.mxu0 0.0
  %424 = vmatpush2.msra.mxu0 0.0
  %425 = vmatprep.subr.mxu0 0.0
  %426 = vmatpush2.msra.mxu0 0.0
  %427 = vmatprep.subr.mxu0 0.0
  %428 = vmatpush2.msra.mxu0 0.0
  %429 = vmatprep.subr.mxu0 0.0
  %430 = vmatpush2.msra.mxu0 0.0
  %431 = vmatprep.subr.mxu0 0.0
  %432 = vmatpush2.msra.mxu0 0.0
  %433 = vmatprep.mubr.f32.mxu0 0.0
  %434 = vmatmul.mubr.f32.gmra.mxu0 %v367
  %v435 = vpop.f32.mrf.mxu0
  %v436 = vadd.f32 0.0, %v435
  %v437 = vpop.f32.mrf.mxu0
  %438 = vdwg.mxu0
  %v439 = vadd.f32 %v177, %v436
  %v440 = vtanh.pop %v439
  %442 = vrot.lane.b32.xlu0 %v365, 8
  %v443 = vpop.permute.xlu0 %442
  %v445 = vsel %vm210, %v440, %v443
  %v447 = vsel %vm291, %v445, 0
  %449 = vmatprep.subr.mxu0 0.0
  %450 = vmatpush1.msra.mxu0 0.0
  %451 = vmatprep.subr.mxu0 0.0
  %452 = vmatpush1.msra.mxu0 0.0
  %453 = vmatprep.subr.mxu0 0.0
  %454 = vmatpush1.msra.mxu0 0.0
  %455 = vmatprep.subr.mxu0 0.0
  %456 = vmatpush1.msra.mxu0 0.0
  %457 = vmatprep.subr.mxu0 0.0
  %458 = vmatpush1.msra.mxu0 0.0
  %459 = vmatprep.subr.mxu0 0.0
  %460 = vmatpush1.msra.mxu0 0.0
  %461 = vmatprep.subr.mxu0 0.0
  %462 = vmatpush1.msra.mxu0 0.0
  %463 = vmatprep.subr.mxu0 0.0
  %464 = vmatpush1.msra.mxu0 0.0
  %465 = vmatprep.subr.mxu0 0.0
  %466 = vmatpush1.msra.mxu0 0.0
  %467 = vmatprep.subr.mxu0 0.0
  %468 = vmatpush1.msra.mxu0 0.0
  %469 = vmatprep.subr.mxu0 0.0
  %470 = vmatpush1.msra.mxu0 0.0
  %471 = vmatprep.subr.mxu0 0.0
  %472 = vmatpush1.msra.mxu0 0.0
  %473 = vmatprep.subr.mxu0 0.0
  %474 = vmatpush1.msra.mxu0 0.0
  %475 = vmatprep.subr.mxu0 0.0
  %476 = vmatpush1.msra.mxu0 0.0
  %477 = vmatprep.subr.mxu0 0.0
  %478 = vmatpush1.msra.mxu0 %v14
  %479 = vmatprep.subr.mxu0 0.0
  %480 = vmatpush1.msra.mxu0 %v13
  %481 = vmatprep.subr.mxu0 0.0
  %482 = vmatpush2.msra.mxu0 0.0
  %483 = vmatprep.subr.mxu0 0.0
  %484 = vmatpush2.msra.mxu0 0.0
  %485 = vmatprep.subr.mxu0 0.0
  %486 = vmatpush2.msra.mxu0 0.0
  %487 = vmatprep.subr.mxu0 0.0
  %488 = vmatpush2.msra.mxu0 0.0
  %489 = vmatprep.subr.mxu0 0.0
  %490 = vmatpush2.msra.mxu0 0.0
  %491 = vmatprep.subr.mxu0 0.0
  %492 = vmatpush2.msra.mxu0 0.0
  %493 = vmatprep.subr.mxu0 0.0
  %494 = vmatpush2.msra.mxu0 0.0
  %495 = vmatprep.subr.mxu0 0.0
  %496 = vmatpush2.msra.mxu0 0.0
  %497 = vmatprep.subr.mxu0 0.0
  %498 = vmatpush2.msra.mxu0 0.0
  %499 = vmatprep.subr.mxu0 0.0
  %500 = vmatpush2.msra.mxu0 0.0
  %501 = vmatprep.subr.mxu0 0.0
  %502 = vmatpush2.msra.mxu0 0.0
  %503 = vmatprep.subr.mxu0 0.0
  %504 = vmatpush2.msra.mxu0 0.0
  %505 = vmatprep.subr.mxu0 0.0
  %506 = vmatpush2.msra.mxu0 0.0
  %507 = vmatprep.subr.mxu0 0.0
  %508 = vmatpush2.msra.mxu0 0.0
  %509 = vmatprep.subr.mxu0 0.0
  %510 = vmatpush2.msra.mxu0 0.0
  %511 = vmatprep.subr.mxu0 0.0
  %512 = vmatpush2.msra.mxu0 0.0
  %513 = vmatprep.mubr.f32.mxu0 0.0
  %514 = vmatmul.mubr.f32.gmra.mxu0 %v447
  %v515 = vpop.f32.mrf.mxu0
  %v516 = vadd.f32 %v290, %v515
  %v517 = vpop.f32.mrf.mxu0
  %518 = vdwg.mxu0
  %v519 = vtanh.pop %v516
  %v521 = vsel %vm210, %v440, 0
  %523 = vmatprep.subr.mxu0 0.0
  %524 = vmatpush1.msra.mxu0 0.0
  %525 = vmatprep.subr.mxu0 0.0
  %526 = vmatpush1.msra.mxu0 0.0
  %527 = vmatprep.subr.mxu0 0.0
  %528 = vmatpush1.msra.mxu0 0.0
  %529 = vmatprep.subr.mxu0 0.0
  %530 = vmatpush1.msra.mxu0 0.0
  %531 = vmatprep.subr.mxu0 0.0
  %532 = vmatpush1.msra.mxu0 0.0
  %533 = vmatprep.subr.mxu0 0.0
  %534 = vmatpush1.msra.mxu0 0.0
  %535 = vmatprep.subr.mxu0 0.0
  %536 = vmatpush1.msra.mxu0 0.0
  %537 = vmatprep.subr.mxu0 0.0
  %538 = vmatpush1.msra.mxu0 0.0
  %539 = vmatprep.subr.mxu0 0.0
  %540 = vmatpush1.msra.mxu0 0.0
  %541 = vmatprep.subr.mxu0 0.0
  %542 = vmatpush1.msra.mxu0 0.0
  %543 = vmatprep.subr.mxu0 0.0
  %544 = vmatpush1.msra.mxu0 0.0
  %545 = vmatprep.subr.mxu0 0.0
  %546 = vmatpush1.msra.mxu0 0.0
  %547 = vmatprep.subr.mxu0 0.0
  %548 = vmatpush1.msra.mxu0 0.0
  %549 = vmatprep.subr.mxu0 0.0
  %550 = vmatpush1.msra.mxu0 0.0
  %551 = vmatprep.subr.mxu0 0.0
  %552 = vmatpush1.msra.mxu0 0.0
  %553 = vmatprep.subr.mxu0 0.0
  %554 = vmatpush1.msra.mxu0 %v12
  %555 = vmatprep.subr.mxu0 0.0
  %556 = vmatpush2.msra.mxu0 0.0
  %557 = vmatprep.subr.mxu0 0.0
  %558 = vmatpush2.msra.mxu0 0.0
  %559 = vmatprep.subr.mxu0 0.0
  %560 = vmatpush2.msra.mxu0 0.0
  %561 = vmatprep.subr.mxu0 0.0
  %562 = vmatpush2.msra.mxu0 0.0
  %563 = vmatprep.subr.mxu0 0.0
  %564 = vmatpush2.msra.mxu0 0.0
  %565 = vmatprep.subr.mxu0 0.0
  %566 = vmatpush2.msra.mxu0 0.0
  %567 = vmatprep.subr.mxu0 0.0
  %568 = vmatpush2.msra.mxu0 0.0
  %569 = vmatprep.subr.mxu0 0.0
  %570 = vmatpush2.msra.mxu0 0.0
  %571 = vmatprep.subr.mxu0 0.0
  %572 = vmatpush2.msra.mxu0 0.0
  %573 = vmatprep.subr.mxu0 0.0
  %574 = vmatpush2.msra.mxu0 0.0
  %575 = vmatprep.subr.mxu0 0.0
  %576 = vmatpush2.msra.mxu0 0.0
  %577 = vmatprep.subr.mxu0 0.0
  %578 = vmatpush2.msra.mxu0 0.0
  %579 = vmatprep.subr.mxu0 0.0
  %580 = vmatpush2.msra.mxu0 0.0
  %581 = vmatprep.subr.mxu0 0.0
  %582 = vmatpush2.msra.mxu0 0.0
  %583 = vmatprep.subr.mxu0 0.0
  %584 = vmatpush2.msra.mxu0 0.0
  %585 = vmatprep.subr.mxu0 0.0
  %586 = vmatpush2.msra.mxu0 0.0
  %587 = vmatprep.mubr.f32.mxu0 0.0
  %588 = vmatmul.mubr.f32.gmra.mxu0 %v521
  %v589 = vpop.f32.mrf.mxu0
  %v590 = vadd.f32 0.0, %v589
  %v591 = vpop.f32.mrf.mxu0
  %592 = vdwg.mxu0
  %v593 = vadd.f32 %v182, %v590
  %v594 = vtanh.pop %v593
  %596 = vrot.lane.b32.xlu0 %v519, 8
  %v597 = vpop.permute.xlu0 %596
  %v599 = vsel %vm210, %v594, %v597
  %v601 = vsel %vm291, %v599, 0
  %603 = vmatprep.subr.mxu0 0.0
  %604 = vmatpush1.msra.mxu0 0.0
  %605 = vmatprep.subr.mxu0 0.0
  %606 = vmatpush1.msra.mxu0 0.0
  %607 = vmatprep.subr.mxu0 0.0
  %608 = vmatpush1.msra.mxu0 0.0
  %609 = vmatprep.subr.mxu0 0.0
  %610 = vmatpush1.msra.mxu0 0.0
  %611 = vmatprep.subr.mxu0 0.0
  %612 = vmatpush1.msra.mxu0 0.0
  %613 = vmatprep.subr.mxu0 0.0
  %614 = vmatpush1.msra.mxu0 0.0
  %615 = vmatprep.subr.mxu0 0.0
  %616 = vmatpush1.msra.mxu0 0.0
  %617 = vmatprep.subr.mxu0 0.0
  %618 = vmatpush1.msra.mxu0 0.0
  %619 = vmatprep.subr.mxu0 0.0
  %620 = vmatpush1.msra.mxu0 0.0
  %621 = vmatprep.subr.mxu0 0.0
  %622 = vmatpush1.msra.mxu0 0.0
  %623 = vmatprep.subr.mxu0 0.0
  %624 = vmatpush1.msra.mxu0 0.0
  %625 = vmatprep.subr.mxu0 0.0
  %626 = vmatpush1.msra.mxu0 0.0
  %627 = vmatprep.subr.mxu0 0.0
  %628 = vmatpush1.msra.mxu0 0.0
  %629 = vmatprep.subr.mxu0 0.0
  %630 = vmatpush1.msra.mxu0 0.0
  %631 = vmatprep.subr.mxu0 0.0
  %632 = vmatpush1.msra.mxu0 %v14
  %633 = vmatprep.subr.mxu0 0.0
  %634 = vmatpush1.msra.mxu0 %v13
  %635 = vmatprep.subr.mxu0 0.0
  %636 = vmatpush2.msra.mxu0 0.0
  %637 = vmatprep.subr.mxu0 0.0
  %638 = vmatpush2.msra.mxu0 0.0
  %639 = vmatprep.subr.mxu0 0.0
  %640 = vmatpush2.msra.mxu0 0.0
  %641 = vmatprep.subr.mxu0 0.0
  %642 = vmatpush2.msra.mxu0 0.0
  %643 = vmatprep.subr.mxu0 0.0
  %644 = vmatpush2.msra.mxu0 0.0
  %645 = vmatprep.subr.mxu0 0.0
  %646 = vmatpush2.msra.mxu0 0.0
  %647 = vmatprep.subr.mxu0 0.0
  %648 = vmatpush2.msra.mxu0 0.0
  %649 = vmatprep.subr.mxu0 0.0
  %650 = vmatpush2.msra.mxu0 0.0
  %651 = vmatprep.subr.mxu0 0.0
  %652 = vmatpush2.msra.mxu0 0.0
  %653 = vmatprep.subr.mxu0 0.0
  %654 = vmatpush2.msra.mxu0 0.0
  %655 = vmatprep.subr.mxu0 0.0
  %656 = vmatpush2.msra.mxu0 0.0
  %657 = vmatprep.subr.mxu0 0.0
  %658 = vmatpush2.msra.mxu0 0.0
  %659 = vmatprep.subr.mxu0 0.0
  %660 = vmatpush2.msra.mxu0 0.0
  %661 = vmatprep.subr.mxu0 0.0
  %662 = vmatpush2.msra.mxu0 0.0
  %663 = vmatprep.subr.mxu0 0.0
  %664 = vmatpush2.msra.mxu0 0.0
  %665 = vmatprep.subr.mxu0 0.0
  %666 = vmatpush2.msra.mxu0 0.0
  %667 = vmatprep.mubr.f32.mxu0 0.0
  %668 = vmatmul.mubr.f32.gmra.mxu0 %v601
  %v669 = vpop.f32.mrf.mxu0
  %v670 = vadd.f32 %v290, %v669
  %v671 = vpop.f32.mrf.mxu0
  %672 = vdwg.mxu0
  %v673 = vtanh.pop %v670
  %v675 = vsel %vm210, %v594, 0
  %677 = vmatprep.subr.mxu0 0.0
  %678 = vmatpush1.msra.mxu0 0.0
  %679 = vmatprep.subr.mxu0 0.0
  %680 = vmatpush1.msra.mxu0 0.0
  %681 = vmatprep.subr.mxu0 0.0
  %682 = vmatpush1.msra.mxu0 0.0
  %683 = vmatprep.subr.mxu0 0.0
  %684 = vmatpush1.msra.mxu0 0.0
  %685 = vmatprep.subr.mxu0 0.0
  %686 = vmatpush1.msra.mxu0 0.0
  %687 = vmatprep.subr.mxu0 0.0
  %688 = vmatpush1.msra.mxu0 0.0
  %689 = vmatprep.subr.mxu0 0.0
  %690 = vmatpush1.msra.mxu0 0.0
  %691 = vmatprep.subr.mxu0 0.0
  %692 = vmatpush1.msra.mxu0 0.0
  %693 = vmatprep.subr.mxu0 0.0
  %694 = vmatpush1.msra.mxu0 0.0
  %695 = vmatprep.subr.mxu0 0.0
  %696 = vmatpush1.msra.mxu0 0.0
  %697 = vmatprep.subr.mxu0 0.0
  %698 = vmatpush1.msra.mxu0 0.0
  %699 = vmatprep.subr.mxu0 0.0
  %700 = vmatpush1.msra.mxu0 0.0
  %701 = vmatprep.subr.mxu0 0.0
  %702 = vmatpush1.msra.mxu0 0.0
  %703 = vmatprep.subr.mxu0 0.0
  %704 = vmatpush1.msra.mxu0 0.0
  %705 = vmatprep.subr.mxu0 0.0
  %706 = vmatpush1.msra.mxu0 0.0
  %707 = vmatprep.subr.mxu0 0.0
  %708 = vmatpush1.msra.mxu0 %v12
  %709 = vmatprep.subr.mxu0 0.0
  %710 = vmatpush2.msra.mxu0 0.0
  %711 = vmatprep.subr.mxu0 0.0
  %712 = vmatpush2.msra.mxu0 0.0
  %713 = vmatprep.subr.mxu0 0.0
  %714 = vmatpush2.msra.mxu0 0.0
  %715 = vmatprep.subr.mxu0 0.0
  %716 = vmatpush2.msra.mxu0 0.0
  %717 = vmatprep.subr.mxu0 0.0
  %718 = vmatpush2.msra.mxu0 0.0
  %719 = vmatprep.subr.mxu0 0.0
  %720 = vmatpush2.msra.mxu0 0.0
  %721 = vmatprep.subr.mxu0 0.0
  %722 = vmatpush2.msra.mxu0 0.0
  %723 = vmatprep.subr.mxu0 0.0
  %724 = vmatpush2.msra.mxu0 0.0
  %725 = vmatprep.subr.mxu0 0.0
  %726 = vmatpush2.msra.mxu0 0.0
  %727 = vmatprep.subr.mxu0 0.0
  %728 = vmatpush2.msra.mxu0 0.0
  %729 = vmatprep.subr.mxu0 0.0
  %730 = vmatpush2.msra.mxu0 0.0
  %731 = vmatprep.subr.mxu0 0.0
  %732 = vmatpush2.msra.mxu0 0.0
  %733 = vmatprep.subr.mxu0 0.0
  %734 = vmatpush2.msra.mxu0 0.0
  %735 = vmatprep.subr.mxu0 0.0
  %736 = vmatpush2.msra.mxu0 0.0
  %737 = vmatprep.subr.mxu0 0.0
  %738 = vmatpush2.msra.mxu0 0.0
  %739 = vmatprep.subr.mxu0 0.0
  %740 = vmatpush2.msra.mxu0 0.0
  %741 = vmatprep.mubr.f32.mxu0 0.0
  %742 = vmatmul.mubr.f32.gmra.mxu0 %v675
  %v743 = vpop.f32.mrf.mxu0
  %v744 = vadd.f32 0.0, %v743
  %v745 = vpop.f32.mrf.mxu0
  %746 = vdwg.mxu0
  %v747 = vadd.f32 %v187, %v744
  %v748 = vtanh.pop %v747
  %750 = vrot.lane.b32.xlu0 %v673, 8
  %v751 = vpop.permute.xlu0 %750
  %v753 = vsel %vm210, %v748, %v751
  %v755 = vsel %vm291, %v753, 0
  %757 = vmatprep.subr.mxu0 0.0
  %758 = vmatpush1.msra.mxu0 0.0
  %759 = vmatprep.subr.mxu0 0.0
  %760 = vmatpush1.msra.mxu0 0.0
  %761 = vmatprep.subr.mxu0 0.0
  %762 = vmatpush1.msra.mxu0 0.0
  %763 = vmatprep.subr.mxu0 0.0
  %764 = vmatpush1.msra.mxu0 0.0
  %765 = vmatprep.subr.mxu0 0.0
  %766 = vmatpush1.msra.mxu0 0.0
  %767 = vmatprep.subr.mxu0 0.0
  %768 = vmatpush1.msra.mxu0 0.0
  %769 = vmatprep.subr.mxu0 0.0
  %770 = vmatpush1.msra.mxu0 0.0
  %771 = vmatprep.subr.mxu0 0.0
  %772 = vmatpush1.msra.mxu0 0.0
  %773 = vmatprep.subr.mxu0 0.0
  %774 = vmatpush1.msra.mxu0 0.0
  %775 = vmatprep.subr.mxu0 0.0
  %776 = vmatpush1.msra.mxu0 0.0
  %777 = vmatprep.subr.mxu0 0.0
  %778 = vmatpush1.msra.mxu0 0.0
  %779 = vmatprep.subr.mxu0 0.0
  %780 = vmatpush1.msra.mxu0 0.0
  %781 = vmatprep.subr.mxu0 0.0
  %782 = vmatpush1.msra.mxu0 0.0
  %783 = vmatprep.subr.mxu0 0.0
  %784 = vmatpush1.msra.mxu0 0.0
  %785 = vmatprep.subr.mxu0 0.0
  %786 = vmatpush1.msra.mxu0 %v14
  %787 = vmatprep.subr.mxu0 0.0
  %788 = vmatpush1.msra.mxu0 %v13
  %789 = vmatprep.subr.mxu0 0.0
  %790 = vmatpush2.msra.mxu0 0.0
  %791 = vmatprep.subr.mxu0 0.0
  %792 = vmatpush2.msra.mxu0 0.0
  %793 = vmatprep.subr.mxu0 0.0
  %794 = vmatpush2.msra.mxu0 0.0
  %795 = vmatprep.subr.mxu0 0.0
  %796 = vmatpush2.msra.mxu0 0.0
  %797 = vmatprep.subr.mxu0 0.0
  %798 = vmatpush2.msra.mxu0 0.0
  %799 = vmatprep.subr.mxu0 0.0
  %800 = vmatpush2.msra.mxu0 0.0
  %801 = vmatprep.subr.mxu0 0.0
  %802 = vmatpush2.msra.mxu0 0.0
  %803 = vmatprep.subr.mxu0 0.0
  %804 = vmatpush2.msra.mxu0 0.0
  %805 = vmatprep.subr.mxu0 0.0
  %806 = vmatpush2.msra.mxu0 0.0
  %807 = vmatprep.subr.mxu0 0.0
  %808 = vmatpush2.msra.mxu0 0.0
  %809 = vmatprep.subr.mxu0 0.0
  %810 = vmatpush2.msra.mxu0 0.0
  %811 = vmatprep.subr.mxu0 0.0
  %812 = vmatpush2.msra.mxu0 0.0
  %813 = vmatprep.subr.mxu0 0.0
  %814 = vmatpush2.msra.mxu0 0.0
  %815 = vmatprep.subr.mxu0 0.0
  %816 = vmatpush2.msra.mxu0 0.0
  %817 = vmatprep.subr.mxu0 0.0
  %818 = vmatpush2.msra.mxu0 0.0
  %819 = vmatprep.subr.mxu0 0.0
  %820 = vmatpush2.msra.mxu0 0.0
  %821 = vmatprep.mubr.f32.mxu0 0.0
  %822 = vmatmul.mubr.f32.gmra.mxu0 %v755
  %v823 = vpop.f32.mrf.mxu0
  %v824 = vadd.f32 %v290, %v823
  %v825 = vpop.f32.mrf.mxu0
  %826 = vdwg.mxu0
  %v827 = vtanh.pop %v824
  %v829 = vsel %vm210, %v748, 0
  %831 = vmatprep.subr.mxu0 0.0
  %832 = vmatpush1.msra.mxu0 0.0
  %833 = vmatprep.subr.mxu0 0.0
  %834 = vmatpush1.msra.mxu0 0.0
  %835 = vmatprep.subr.mxu0 0.0
  %836 = vmatpush1.msra.mxu0 0.0
  %837 = vmatprep.subr.mxu0 0.0
  %838 = vmatpush1.msra.mxu0 0.0
  %839 = vmatprep.subr.mxu0 0.0
  %840 = vmatpush1.msra.mxu0 0.0
  %841 = vmatprep.subr.mxu0 0.0
  %842 = vmatpush1.msra.mxu0 0.0
  %843 = vmatprep.subr.mxu0 0.0
  %844 = vmatpush1.msra.mxu0 0.0
  %845 = vmatprep.subr.mxu0 0.0
  %846 = vmatpush1.msra.mxu0 0.0
  %847 = vmatprep.subr.mxu0 0.0
  %848 = vmatpush1.msra.mxu0 0.0
  %849 = vmatprep.subr.mxu0 0.0
  %850 = vmatpush1.msra.mxu0 0.0
  %851 = vmatprep.subr.mxu0 0.0
  %852 = vmatpush1.msra.mxu0 0.0
  %853 = vmatprep.subr.mxu0 0.0
  %854 = vmatpush1.msra.mxu0 0.0
  %855 = vmatprep.subr.mxu0 0.0
  %856 = vmatpush1.msra.mxu0 0.0
  %857 = vmatprep.subr.mxu0 0.0
  %858 = vmatpush1.msra.mxu0 0.0
  %859 = vmatprep.subr.mxu0 0.0
  %860 = vmatpush1.msra.mxu0 0.0
  %861 = vmatprep.subr.mxu0 0.0
  %862 = vmatpush1.msra.mxu0 %v12
  %863 = vmatprep.subr.mxu0 0.0
  %864 = vmatpush2.msra.mxu0 0.0
  %865 = vmatprep.subr.mxu0 0.0
  %866 = vmatpush2.msra.mxu0 0.0
  %867 = vmatprep.subr.mxu0 0.0
  %868 = vmatpush2.msra.mxu0 0.0
  %869 = vmatprep.subr.mxu0 0.0
  %870 = vmatpush2.msra.mxu0 0.0
  %871 = vmatprep.subr.mxu0 0.0
  %872 = vmatpush2.msra.mxu0 0.0
  %873 = vmatprep.subr.mxu0 0.0
  %874 = vmatpush2.msra.mxu0 0.0
  %875 = vmatprep.subr.mxu0 0.0
  %876 = vmatpush2.msra.mxu0 0.0
  %877 = vmatprep.subr.mxu0 0.0
  %878 = vmatpush2.msra.mxu0 0.0
  %879 = vmatprep.subr.mxu0 0.0
  %880 = vmatpush2.msra.mxu0 0.0
  %881 = vmatprep.subr.mxu0 0.0
  %882 = vmatpush2.msra.mxu0 0.0
  %883 = vmatprep.subr.mxu0 0.0
  %884 = vmatpush2.msra.mxu0 0.0
  %885 = vmatprep.subr.mxu0 0.0
  %886 = vmatpush2.msra.mxu0 0.0
  %887 = vmatprep.subr.mxu0 0.0
  %888 = vmatpush2.msra.mxu0 0.0
  %889 = vmatprep.subr.mxu0 0.0
  %890 = vmatpush2.msra.mxu0 0.0
  %891 = vmatprep.subr.mxu0 0.0
  %892 = vmatpush2.msra.mxu0 0.0
  %893 = vmatprep.subr.mxu0 0.0
  %894 = vmatpush2.msra.mxu0 0.0
  %895 = vmatprep.mubr.f32.mxu0 0.0
  %896 = vmatmul.mubr.f32.gmra.mxu0 %v829
  %v897 = vpop.f32.mrf.mxu0
  %v898 = vadd.f32 0.0, %v897
  %v899 = vpop.f32.mrf.mxu0
  %900 = vdwg.mxu0
  %v901 = vadd.f32 %v192, %v898
  %v902 = vtanh.pop %v901
  %904 = vrot.lane.b32.xlu0 %v827, 8
  %v905 = vpop.permute.xlu0 %904
  %v907 = vsel %vm210, %v902, %v905
  %v909 = vsel %vm291, %v907, 0
  %911 = vmatprep.subr.mxu0 0.0
  %912 = vmatpush1.msra.mxu0 0.0
  %913 = vmatprep.subr.mxu0 0.0
  %914 = vmatpush1.msra.mxu0 0.0
  %915 = vmatprep.subr.mxu0 0.0
  %916 = vmatpush1.msra.mxu0 0.0
  %917 = vmatprep.subr.mxu0 0.0
  %918 = vmatpush1.msra.mxu0 0.0
  %919 = vmatprep.subr.mxu0 0.0
  %920 = vmatpush1.msra.mxu0 0.0
  %921 = vmatprep.subr.mxu0 0.0
  %922 = vmatpush1.msra.mxu0 0.0
  %923 = vmatprep.subr.mxu0 0.0
  %924 = vmatpush1.msra.mxu0 0.0
  %925 = vmatprep.subr.mxu0 0.0
  %926 = vmatpush1.msra.mxu0 0.0
  %927 = vmatprep.subr.mxu0 0.0
  %928 = vmatpush1.msra.mxu0 0.0
  %929 = vmatprep.subr.mxu0 0.0
  %930 = vmatpush1.msra.mxu0 0.0
  %931 = vmatprep.subr.mxu0 0.0
  %932 = vmatpush1.msra.mxu0 0.0
  %933 = vmatprep.subr.mxu0 0.0
  %934 = vmatpush1.msra.mxu0 0.0
  %935 = vmatprep.subr.mxu0 0.0
  %936 = vmatpush1.msra.mxu0 0.0
  %937 = vmatprep.subr.mxu0 0.0
  %938 = vmatpush1.msra.mxu0 0.0
  %939 = vmatprep.subr.mxu0 0.0
  %940 = vmatpush1.msra.mxu0 %v14
  %941 = vmatprep.subr.mxu0 0.0
  %942 = vmatpush1.msra.mxu0 %v13
  %943 = vmatprep.subr.mxu0 0.0
  %944 = vmatpush2.msra.mxu0 0.0
  %945 = vmatprep.subr.mxu0 0.0
  %946 = vmatpush2.msra.mxu0 0.0
  %947 = vmatprep.subr.mxu0 0.0
  %948 = vmatpush2.msra.mxu0 0.0
  %949 = vmatprep.subr.mxu0 0.0
  %950 = vmatpush2.msra.mxu0 0.0
  %951 = vmatprep.subr.mxu0 0.0
  %952 = vmatpush2.msra.mxu0 0.0
  %953 = vmatprep.subr.mxu0 0.0
  %954 = vmatpush2.msra.mxu0 0.0
  %955 = vmatprep.subr.mxu0 0.0
  %956 = vmatpush2.msra.mxu0 0.0
  %957 = vmatprep.subr.mxu0 0.0
  %958 = vmatpush2.msra.mxu0 0.0
  %959 = vmatprep.subr.mxu0 0.0
  %960 = vmatpush2.msra.mxu0 0.0
  %961 = vmatprep.subr.mxu0 0.0
  %962 = vmatpush2.msra.mxu0 0.0
  %963 = vmatprep.subr.mxu0 0.0
  %964 = vmatpush2.msra.mxu0 0.0
  %965 = vmatprep.subr.mxu0 0.0
  %966 = vmatpush2.msra.mxu0 0.0
  %967 = vmatprep.subr.mxu0 0.0
  %968 = vmatpush2.msra.mxu0 0.0
  %969 = vmatprep.subr.mxu0 0.0
  %970 = vmatpush2.msra.mxu0 0.0
  %971 = vmatprep.subr.mxu0 0.0
  %972 = vmatpush2.msra.mxu0 0.0
  %973 = vmatprep.subr.mxu0 0.0
  %974 = vmatpush2.msra.mxu0 0.0
  %975 = vmatprep.mubr.f32.mxu0 0.0
  %976 = vmatmul.mubr.f32.gmra.mxu0 %v909
  %v977 = vpop.f32.mrf.mxu0
  %v978 = vadd.f32 %v290, %v977
  %v979 = vpop.f32.mrf.mxu0
  %980 = vdwg.mxu0
  %v981 = vtanh.pop %v978
  %v983 = vsel %vm210, %v902, 0
  %985 = vmatprep.subr.mxu0 0.0
  %986 = vmatpush1.msra.mxu0 0.0
  %987 = vmatprep.subr.mxu0 0.0
  %988 = vmatpush1.msra.mxu0 0.0
  %989 = vmatprep.subr.mxu0 0.0
  %990 = vmatpush1.msra.mxu0 0.0
  %991 = vmatprep.subr.mxu0 0.0
  %992 = vmatpush1.msra.mxu0 0.0
  %993 = vmatprep.subr.mxu0 0.0
  %994 = vmatpush1.msra.mxu0 0.0
  %995 = vmatprep.subr.mxu0 0.0
  %996 = vmatpush1.msra.mxu0 0.0
  %997 = vmatprep.subr.mxu0 0.0
  %998 = vmatpush1.msra.mxu0 0.0
  %999 = vmatprep.subr.mxu0 0.0
  %1000 = vmatpush1.msra.mxu0 0.0
  %1001 = vmatprep.subr.mxu0 0.0
  %1002 = vmatpush1.msra.mxu0 0.0
  %1003 = vmatprep.subr.mxu0 0.0
  %1004 = vmatpush1.msra.mxu0 0.0
  %1005 = vmatprep.subr.mxu0 0.0
  %1006 = vmatpush1.msra.mxu0 0.0
  %1007 = vmatprep.subr.mxu0 0.0
  %1008 = vmatpush1.msra.mxu0 0.0
  %1009 = vmatprep.subr.mxu0 0.0
  %1010 = vmatpush1.msra.mxu0 0.0
  %1011 = vmatprep.subr.mxu0 0.0
  %1012 = vmatpush1.msra.mxu0 0.0
  %1013 = vmatprep.subr.mxu0 0.0
  %1014 = vmatpush1.msra.mxu0 0.0
  %1015 = vmatprep.subr.mxu0 0.0
  %1016 = vmatpush1.msra.mxu0 %v12
  %1017 = vmatprep.subr.mxu0 0.0
  %1018 = vmatpush2.msra.mxu0 0.0
  %1019 = vmatprep.subr.mxu0 0.0
  %1020 = vmatpush2.msra.mxu0 0.0
  %1021 = vmatprep.subr.mxu0 0.0
  %1022 = vmatpush2.msra.mxu0 0.0
  %1023 = vmatprep.subr.mxu0 0.0
  %1024 = vmatpush2.msra.mxu0 0.0
  %1025 = vmatprep.subr.mxu0 0.0
  %1026 = vmatpush2.msra.mxu0 0.0
  %1027 = vmatprep.subr.mxu0 0.0
  %1028 = vmatpush2.msra.mxu0 0.0
  %1029 = vmatprep.subr.mxu0 0.0
  %1030 = vmatpush2.msra.mxu0 0.0
  %1031 = vmatprep.subr.mxu0 0.0
  %1032 = vmatpush2.msra.mxu0 0.0
  %1033 = vmatprep.subr.mxu0 0.0
  %1034 = vmatpush2.msra.mxu0 0.0
  %1035 = vmatprep.subr.mxu0 0.0
  %1036 = vmatpush2.msra.mxu0 0.0
  %1037 = vmatprep.subr.mxu0 0.0
  %1038 = vmatpush2.msra.mxu0 0.0
  %1039 = vmatprep.subr.mxu0 0.0
  %1040 = vmatpush2.msra.mxu0 0.0
  %1041 = vmatprep.subr.mxu0 0.0
  %1042 = vmatpush2.msra.mxu0 0.0
  %1043 = vmatprep.subr.mxu0 0.0
  %1044 = vmatpush2.msra.mxu0 0.0
  %1045 = vmatprep.subr.mxu0 0.0
  %1046 = vmatpush2.msra.mxu0 0.0
  %1047 = vmatprep.subr.mxu0 0.0
  %1048 = vmatpush2.msra.mxu0 0.0
  %1049 = vmatprep.mubr.f32.mxu0 0.0
  %1050 = vmatmul.mubr.f32.gmra.mxu0 %v983
  %v1051 = vpop.f32.mrf.mxu0
  %v1052 = vadd.f32 0.0, %v1051
  %v1053 = vpop.f32.mrf.mxu0
  %1054 = vdwg.mxu0
  %v1055 = vadd.f32 %v197, %v1052
  %v1056 = vtanh.pop %v1055
  %1058 = vrot.lane.b32.xlu0 %v981, 8
  %v1059 = vpop.permute.xlu0 %1058
  %v1061 = vsel %vm210, %v1056, %v1059
  %v1063 = vsel %vm291, %v1061, 0
  %1065 = vmatprep.subr.mxu0 0.0
  %1066 = vmatpush1.msra.mxu0 0.0
  %1067 = vmatprep.subr.mxu0 0.0
  %1068 = vmatpush1.msra.mxu0 0.0
  %1069 = vmatprep.subr.mxu0 0.0
  %1070 = vmatpush1.msra.mxu0 0.0
  %1071 = vmatprep.subr.mxu0 0.0
  %1072 = vmatpush1.msra.mxu0 0.0
  %1073 = vmatprep.subr.mxu0 0.0
  %1074 = vmatpush1.msra.mxu0 0.0
  %1075 = vmatprep.subr.mxu0 0.0
  %1076 = vmatpush1.msra.mxu0 0.0
  %1077 = vmatprep.subr.mxu0 0.0
  %1078 = vmatpush1.msra.mxu0 0.0
  %1079 = vmatprep.subr.mxu0 0.0
  %1080 = vmatpush1.msra.mxu0 0.0
  %1081 = vmatprep.subr.mxu0 0.0
  %1082 = vmatpush1.msra.mxu0 0.0
  %1083 = vmatprep.subr.mxu0 0.0
  %1084 = vmatpush1.msra.mxu0 0.0
  %1085 = vmatprep.subr.mxu0 0.0
  %1086 = vmatpush1.msra.mxu0 0.0
  %1087 = vmatprep.subr.mxu0 0.0
  %1088 = vmatpush1.msra.mxu0 0.0
  %1089 = vmatprep.subr.mxu0 0.0
  %1090 = vmatpush1.msra.mxu0 0.0
  %1091 = vmatprep.subr.mxu0 0.0
  %1092 = vmatpush1.msra.mxu0 0.0
  %1093 = vmatprep.subr.mxu0 0.0
  %1094 = vmatpush1.msra.mxu0 %v14
  %1095 = vmatprep.subr.mxu0 0.0
  %1096 = vmatpush1.msra.mxu0 %v13
  %1097 = vmatprep.subr.mxu0 0.0
  %1098 = vmatpush2.msra.mxu0 0.0
  %1099 = vmatprep.subr.mxu0 0.0
  %1100 = vmatpush2.msra.mxu0 0.0
  %1101 = vmatprep.subr.mxu0 0.0
  %1102 = vmatpush2.msra.mxu0 0.0
  %1103 = vmatprep.subr.mxu0 0.0
  %1104 = vmatpush2.msra.mxu0 0.0
  %1105 = vmatprep.subr.mxu0 0.0
  %1106 = vmatpush2.msra.mxu0 0.0
  %1107 = vmatprep.subr.mxu0 0.0
  %1108 = vmatpush2.msra.mxu0 0.0
  %1109 = vmatprep.subr.mxu0 0.0
  %1110 = vmatpush2.msra.mxu0 0.0
  %1111 = vmatprep.subr.mxu0 0.0
  %1112 = vmatpush2.msra.mxu0 0.0
  %1113 = vmatprep.subr.mxu0 0.0
  %1114 = vmatpush2.msra.mxu0 0.0
  %1115 = vmatprep.subr.mxu0 0.0
  %1116 = vmatpush2.msra.mxu0 0.0
  %1117 = vmatprep.subr.mxu0 0.0
  %1118 = vmatpush2.msra.mxu0 0.0
  %1119 = vmatprep.subr.mxu0 0.0
  %1120 = vmatpush2.msra.mxu0 0.0
  %1121 = vmatprep.subr.mxu0 0.0
  %1122 = vmatpush2.msra.mxu0 0.0
  %1123 = vmatprep.subr.mxu0 0.0
  %1124 = vmatpush2.msra.mxu0 0.0
  %1125 = vmatprep.subr.mxu0 0.0
  %1126 = vmatpush2.msra.mxu0 0.0
  %1127 = vmatprep.subr.mxu0 0.0
  %1128 = vmatpush2.msra.mxu0 0.0
  %1129 = vmatprep.mubr.f32.mxu0 0.0
  %1130 = vmatmul.mubr.f32.gmra.mxu0 %v1063
  %v1131 = vpop.f32.mrf.mxu0
  %v1132 = vadd.f32 %v290, %v1131
  %v1133 = vpop.f32.mrf.mxu0
  %1134 = vdwg.mxu0
  %v1135 = vtanh.pop %v1132
  %v1137 = vsel %vm210, %v1056, 0
  %1139 = vmatprep.subr.mxu0 0.0
  %1140 = vmatpush1.msra.mxu0 0.0
  %1141 = vmatprep.subr.mxu0 0.0
  %1142 = vmatpush1.msra.mxu0 0.0
  %1143 = vmatprep.subr.mxu0 0.0
  %1144 = vmatpush1.msra.mxu0 0.0
  %1145 = vmatprep.subr.mxu0 0.0
  %1146 = vmatpush1.msra.mxu0 0.0
  %1147 = vmatprep.subr.mxu0 0.0
  %1148 = vmatpush1.msra.mxu0 0.0
  %1149 = vmatprep.subr.mxu0 0.0
  %1150 = vmatpush1.msra.mxu0 0.0
  %1151 = vmatprep.subr.mxu0 0.0
  %1152 = vmatpush1.msra.mxu0 0.0
  %1153 = vmatprep.subr.mxu0 0.0
  %1154 = vmatpush1.msra.mxu0 0.0
  %1155 = vmatprep.subr.mxu0 0.0
  %1156 = vmatpush1.msra.mxu0 0.0
  %1157 = vmatprep.subr.mxu0 0.0
  %1158 = vmatpush1.msra.mxu0 0.0
  %1159 = vmatprep.subr.mxu0 0.0
  %1160 = vmatpush1.msra.mxu0 0.0
  %1161 = vmatprep.subr.mxu0 0.0
  %1162 = vmatpush1.msra.mxu0 0.0
  %1163 = vmatprep.subr.mxu0 0.0
  %1164 = vmatpush1.msra.mxu0 0.0
  %1165 = vmatprep.subr.mxu0 0.0
  %1166 = vmatpush1.msra.mxu0 0.0
  %1167 = vmatprep.subr.mxu0 0.0
  %1168 = vmatpush1.msra.mxu0 0.0
  %1169 = vmatprep.subr.mxu0 0.0
  %1170 = vmatpush1.msra.mxu0 %v12
  %1171 = vmatprep.subr.mxu0 0.0
  %1172 = vmatpush2.msra.mxu0 0.0
  %1173 = vmatprep.subr.mxu0 0.0
  %1174 = vmatpush2.msra.mxu0 0.0
  %1175 = vmatprep.subr.mxu0 0.0
  %1176 = vmatpush2.msra.mxu0 0.0
  %1177 = vmatprep.subr.mxu0 0.0
  %1178 = vmatpush2.msra.mxu0 0.0
  %1179 = vmatprep.subr.mxu0 0.0
  %1180 = vmatpush2.msra.mxu0 0.0
  %1181 = vmatprep.subr.mxu0 0.0
  %1182 = vmatpush2.msra.mxu0 0.0
  %1183 = vmatprep.subr.mxu0 0.0
  %1184 = vmatpush2.msra.mxu0 0.0
  %1185 = vmatprep.subr.mxu0 0.0
  %1186 = vmatpush2.msra.mxu0 0.0
  %1187 = vmatprep.subr.mxu0 0.0
  %1188 = vmatpush2.msra.mxu0 0.0
  %1189 = vmatprep.subr.mxu0 0.0
  %1190 = vmatpush2.msra.mxu0 0.0
  %1191 = vmatprep.subr.mxu0 0.0
  %1192 = vmatpush2.msra.mxu0 0.0
  %1193 = vmatprep.subr.mxu0 0.0
  %1194 = vmatpush2.msra.mxu0 0.0
  %1195 = vmatprep.subr.mxu0 0.0
  %1196 = vmatpush2.msra.mxu0 0.0
  %1197 = vmatprep.subr.mxu0 0.0
  %1198 = vmatpush2.msra.mxu0 0.0
  %1199 = vmatprep.subr.mxu0 0.0
  %1200 = vmatpush2.msra.mxu0 0.0
  %1201 = vmatprep.subr.mxu0 0.0
  %1202 = vmatpush2.msra.mxu0 0.0
  %1203 = vmatprep.mubr.f32.mxu0 0.0
  %1204 = vmatmul.mubr.f32.gmra.mxu0 %v1137
  %v1205 = vpop.f32.mrf.mxu0
  %v1206 = vadd.f32 0.0, %v1205
  %v1207 = vpop.f32.mrf.mxu0
  %1208 = vdwg.mxu0
  %v1209 = vadd.f32 %v202, %v1206
  %v1210 = vtanh.pop %v1209
  %1212 = vrot.lane.b32.xlu0 %v1135, 8
  %v1213 = vpop.permute.xlu0 %1212
  %v1215 = vsel %vm210, %v1210, %v1213
  %v1217 = vsel %vm291, %v1215, 0
  %1219 = vmatprep.subr.mxu0 0.0
  %1220 = vmatpush1.msra.mxu0 0.0
  %1221 = vmatprep.subr.mxu0 0.0
  %1222 = vmatpush1.msra.mxu0 0.0
  %1223 = vmatprep.subr.mxu0 0.0
  %1224 = vmatpush1.msra.mxu0 0.0
  %1225 = vmatprep.subr.mxu0 0.0
  %1226 = vmatpush1.msra.mxu0 0.0
  %1227 = vmatprep.subr.mxu0 0.0
  %1228 = vmatpush1.msra.mxu0 0.0
  %1229 = vmatprep.subr.mxu0 0.0
  %1230 = vmatpush1.msra.mxu0 0.0
  %1231 = vmatprep.subr.mxu0 0.0
  %1232 = vmatpush1.msra.mxu0 0.0
  %1233 = vmatprep.subr.mxu0 0.0
  %1234 = vmatpush1.msra.mxu0 0.0
  %1235 = vmatprep.subr.mxu0 0.0
  %1236 = vmatpush1.msra.mxu0 0.0
  %1237 = vmatprep.subr.mxu0 0.0
  %1238 = vmatpush1.msra.mxu0 0.0
  %1239 = vmatprep.subr.mxu0 0.0
  %1240 = vmatpush1.msra.mxu0 0.0
  %1241 = vmatprep.subr.mxu0 0.0
  %1242 = vmatpush1.msra.mxu0 0.0
  %1243 = vmatprep.subr.mxu0 0.0
  %1244 = vmatpush1.msra.mxu0 0.0
  %1245 = vmatprep.subr.mxu0 0.0
  %1246 = vmatpush1.msra.mxu0 0.0
  %1247 = vmatprep.subr.mxu0 0.0
  %1248 = vmatpush1.msra.mxu0 %v14
  %1249 = vmatprep.subr.mxu0 0.0
  %1250 = vmatpush1.msra.mxu0 %v13
  %1251 = vmatprep.subr.mxu0 0.0
  %1252 = vmatpush2.msra.mxu0 0.0
  %1253 = vmatprep.subr.mxu0 0.0
  %1254 = vmatpush2.msra.mxu0 0.0
  %1255 = vmatprep.subr.mxu0 0.0
  %1256 = vmatpush2.msra.mxu0 0.0
  %1257 = vmatprep.subr.mxu0 0.0
  %1258 = vmatpush2.msra.mxu0 0.0
  %1259 = vmatprep.subr.mxu0 0.0
  %1260 = vmatpush2.msra.mxu0 0.0
  %1261 = vmatprep.subr.mxu0 0.0
  %1262 = vmatpush2.msra.mxu0 0.0
  %1263 = vmatprep.subr.mxu0 0.0
  %1264 = vmatpush2.msra.mxu0 0.0
  %1265 = vmatprep.subr.mxu0 0.0
  %1266 = vmatpush2.msra.mxu0 0.0
  %1267 = vmatprep.subr.mxu0 0.0
  %1268 = vmatpush2.msra.mxu0 0.0
  %1269 = vmatprep.subr.mxu0 0.0
  %1270 = vmatpush2.msra.mxu0 0.0
  %1271 = vmatprep.subr.mxu0 0.0
  %1272 = vmatpush2.msra.mxu0 0.0
  %1273 = vmatprep.subr.mxu0 0.0
  %1274 = vmatpush2.msra.mxu0 0.0
  %1275 = vmatprep.subr.mxu0 0.0
  %1276 = vmatpush2.msra.mxu0 0.0
  %1277 = vmatprep.subr.mxu0 0.0
  %1278 = vmatpush2.msra.mxu0 0.0
  %1279 = vmatprep.subr.mxu0 0.0
  %1280 = vmatpush2.msra.mxu0 0.0
  %1281 = vmatprep.subr.mxu0 0.0
  %1282 = vmatpush2.msra.mxu0 0.0
  %1283 = vmatprep.mubr.f32.mxu0 0.0
  %1284 = vmatmul.mubr.f32.gmra.mxu0 %v1217
  %v1285 = vpop.f32.mrf.mxu0
  %v1286 = vadd.f32 %v290, %v1285
  %v1287 = vpop.f32.mrf.mxu0
  %1288 = vdwg.mxu0
  %v1289 = vtanh.pop %v1286
  %v1291 = vsel %vm210, %v1210, 0
  %1293 = vmatprep.subr.mxu0 0.0
  %1294 = vmatpush1.msra.mxu0 0.0
  %1295 = vmatprep.subr.mxu0 0.0
  %1296 = vmatpush1.msra.mxu0 0.0
  %1297 = vmatprep.subr.mxu0 0.0
  %1298 = vmatpush1.msra.mxu0 0.0
  %1299 = vmatprep.subr.mxu0 0.0
  %1300 = vmatpush1.msra.mxu0 0.0
  %1301 = vmatprep.subr.mxu0 0.0
  %1302 = vmatpush1.msra.mxu0 0.0
  %1303 = vmatprep.subr.mxu0 0.0
  %1304 = vmatpush1.msra.mxu0 0.0
  %1305 = vmatprep.subr.mxu0 0.0
  %1306 = vmatpush1.msra.mxu0 0.0
  %1307 = vmatprep.subr.mxu0 0.0
  %1308 = vmatpush1.msra.mxu0 0.0
  %1309 = vmatprep.subr.mxu0 0.0
  %1310 = vmatpush1.msra.mxu0 0.0
  %1311 = vmatprep.subr.mxu0 0.0
  %1312 = vmatpush1.msra.mxu0 0.0
  %1313 = vmatprep.subr.mxu0 0.0
  %1314 = vmatpush1.msra.mxu0 0.0
  %1315 = vmatprep.subr.mxu0 0.0
  %1316 = vmatpush1.msra.mxu0 0.0
  %1317 = vmatprep.subr.mxu0 0.0
  %1318 = vmatpush1.msra.mxu0 0.0
  %1319 = vmatprep.subr.mxu0 0.0
  %1320 = vmatpush1.msra.mxu0 0.0
  %1321 = vmatprep.subr.mxu0 0.0
  %1322 = vmatpush1.msra.mxu0 0.0
  %1323 = vmatprep.subr.mxu0 0.0
  %1324 = vmatpush1.msra.mxu0 %v12
  %1325 = vmatprep.subr.mxu0 0.0
  %1326 = vmatpush2.msra.mxu0 0.0
  %1327 = vmatprep.subr.mxu0 0.0
  %1328 = vmatpush2.msra.mxu0 0.0
  %1329 = vmatprep.subr.mxu0 0.0
  %1330 = vmatpush2.msra.mxu0 0.0
  %1331 = vmatprep.subr.mxu0 0.0
  %1332 = vmatpush2.msra.mxu0 0.0
  %1333 = vmatprep.subr.mxu0 0.0
  %1334 = vmatpush2.msra.mxu0 0.0
  %1335 = vmatprep.subr.mxu0 0.0
  %1336 = vmatpush2.msra.mxu0 0.0
  %1337 = vmatprep.subr.mxu0 0.0
  %1338 = vmatpush2.msra.mxu0 0.0
  %1339 = vmatprep.subr.mxu0 0.0
  %1340 = vmatpush2.msra.mxu0 0.0
  %1341 = vmatprep.subr.mxu0 0.0
  %1342 = vmatpush2.msra.mxu0 0.0
  %1343 = vmatprep.subr.mxu0 0.0
  %1344 = vmatpush2.msra.mxu0 0.0
  %1345 = vmatprep.subr.mxu0 0.0
  %1346 = vmatpush2.msra.mxu0 0.0
  %1347 = vmatprep.subr.mxu0 0.0
  %1348 = vmatpush2.msra.mxu0 0.0
  %1349 = vmatprep.subr.mxu0 0.0
  %1350 = vmatpush2.msra.mxu0 0.0
  %1351 = vmatprep.subr.mxu0 0.0
  %1352 = vmatpush2.msra.mxu0 0.0
  %1353 = vmatprep.subr.mxu0 0.0
  %1354 = vmatpush2.msra.mxu0 0.0
  %1355 = vmatprep.subr.mxu0 0.0
  %1356 = vmatpush2.msra.mxu0 0.0
  %1357 = vmatprep.mubr.f32.mxu0 0.0
  %1358 = vmatmul.mubr.f32.gmra.mxu0 %v1291
  %v1359 = vpop.f32.mrf.mxu0
  %v1360 = vadd.f32 0.0, %v1359
  %v1361 = vpop.f32.mrf.mxu0
  %1362 = vdwg.mxu0
  %v1363 = vadd.f32 %v207, %v1360
  %v1364 = vtanh.pop %v1363
  %1366 = vrot.lane.b32.xlu0 %v1289, 8
  %v1367 = vpop.permute.xlu0 %1366
  %v1369 = vsel %vm210, %v1364, %v1367
  %v1371 = vsel %vm291, %v1369, 0
  %1373 = vmatprep.subr.mxu0 0.0
  %1374 = vmatpush1.msra.mxu0 0.0
  %1375 = vmatprep.subr.mxu0 0.0
  %1376 = vmatpush1.msra.mxu0 0.0
  %1377 = vmatprep.subr.mxu0 0.0
  %1378 = vmatpush1.msra.mxu0 0.0
  %1379 = vmatprep.subr.mxu0 0.0
  %1380 = vmatpush1.msra.mxu0 0.0
  %1381 = vmatprep.subr.mxu0 0.0
  %1382 = vmatpush1.msra.mxu0 0.0
  %1383 = vmatprep.subr.mxu0 0.0
  %1384 = vmatpush1.msra.mxu0 0.0
  %1385 = vmatprep.subr.mxu0 0.0
  %1386 = vmatpush1.msra.mxu0 0.0
  %1387 = vmatprep.subr.mxu0 0.0
  %1388 = vmatpush1.msra.mxu0 0.0
  %1389 = vmatprep.subr.mxu0 0.0
  %1390 = vmatpush1.msra.mxu0 0.0
  %1391 = vmatprep.subr.mxu0 0.0
  %1392 = vmatpush1.msra.mxu0 0.0
  %1393 = vmatprep.subr.mxu0 0.0
  %1394 = vmatpush1.msra.mxu0 0.0
  %1395 = vmatprep.subr.mxu0 0.0
  %1396 = vmatpush1.msra.mxu0 0.0
  %1397 = vmatprep.subr.mxu0 0.0
  %1398 = vmatpush1.msra.mxu0 0.0
  %1399 = vmatprep.subr.mxu0 0.0
  %1400 = vmatpush1.msra.mxu0 0.0
  %1401 = vmatprep.subr.mxu0 0.0
  %1402 = vmatpush1.msra.mxu0 %v14
  %1403 = vmatprep.subr.mxu0 0.0
  %1404 = vmatpush1.msra.mxu0 %v13
  %1405 = vmatprep.subr.mxu0 0.0
  %1406 = vmatpush2.msra.mxu0 0.0
  %1407 = vmatprep.subr.mxu0 0.0
  %1408 = vmatpush2.msra.mxu0 0.0
  %1409 = vmatprep.subr.mxu0 0.0
  %1410 = vmatpush2.msra.mxu0 0.0
  %1411 = vmatprep.subr.mxu0 0.0
  %1412 = vmatpush2.msra.mxu0 0.0
  %1413 = vmatprep.subr.mxu0 0.0
  %1414 = vmatpush2.msra.mxu0 0.0
  %1415 = vmatprep.subr.mxu0 0.0
  %1416 = vmatpush2.msra.mxu0 0.0
  %1417 = vmatprep.subr.mxu0 0.0
  %1418 = vmatpush2.msra.mxu0 0.0
  %1419 = vmatprep.subr.mxu0 0.0
  %1420 = vmatpush2.msra.mxu0 0.0
  %1421 = vmatprep.subr.mxu0 0.0
  %1422 = vmatpush2.msra.mxu0 0.0
  %1423 = vmatprep.subr.mxu0 0.0
  %1424 = vmatpush2.msra.mxu0 0.0
  %1425 = vmatprep.subr.mxu0 0.0
  %1426 = vmatpush2.msra.mxu0 0.0
  %1427 = vmatprep.subr.mxu0 0.0
  %1428 = vmatpush2.msra.mxu0 0.0
  %1429 = vmatprep.subr.mxu0 0.0
  %1430 = vmatpush2.msra.mxu0 0.0
  %1431 = vmatprep.subr.mxu0 0.0
  %1432 = vmatpush2.msra.mxu0 0.0
  %1433 = vmatprep.subr.mxu0 0.0
  %1434 = vmatpush2.msra.mxu0 0.0
  %1435 = vmatprep.subr.mxu0 0.0
  %1436 = vmatpush2.msra.mxu0 0.0
  %1437 = vmatprep.mubr.f32.mxu0 0.0
  %1438 = vmatmul.mubr.f32.gmra.mxu0 %v1371
  %v1439 = vpop.f32.mrf.mxu0
  %v1440 = vadd.f32 %v290, %v1439
  %v1441 = vpop.f32.mrf.mxu0
  %1442 = vdwg.mxu0
  %v1443 = vtanh.pop %v1440
  %v1444 = vlaneseq
  %v1445 = vshrl.u32 %v1444, 7
  %v1446 = vsub.s32 0, %v1445
  %v1447 = vrot.slane %v17, %v1446
  %v1448 = vsel %vm210, %v365, 0
  %v1450 = vsel %vm210, %v519, 0
  %v1452 = vsel %vm210, %v673, 0
  %v1454 = vsel %vm210, %v827, 0
  %v1456 = vsel %vm210, %v981, 0
  %v1458 = vsel %vm210, %v1135, 0
  %v1460 = vsel %vm210, %v1289, 0
  %v1463 = vsel %vm210, %v1443, 0
  %1465 = vmatprep.subr.mxu0 0.0
  %1466 = vmatpush1.msra.mxu0 0.0
  %1467 = vmatprep.subr.mxu0 0.0
  %1468 = vmatpush1.msra.mxu0 0.0
  %1469 = vmatprep.subr.mxu0 0.0
  %1470 = vmatpush1.msra.mxu0 0.0
  %1471 = vmatprep.subr.mxu0 0.0
  %1472 = vmatpush1.msra.mxu0 0.0
  %1473 = vmatprep.subr.mxu0 0.0
  %1474 = vmatpush1.msra.mxu0 0.0
  %1475 = vmatprep.subr.mxu0 0.0
  %1476 = vmatpush1.msra.mxu0 0.0
  %1477 = vmatprep.subr.mxu0 0.0
  %1478 = vmatpush1.msra.mxu0 0.0
  %1479 = vmatprep.subr.mxu0 0.0
  %1480 = vmatpush1.msra.mxu0 0.0
  %1481 = vmatprep.subr.mxu0 0.0
  %1482 = vmatpush1.msra.mxu0 0.0
  %1483 = vmatprep.subr.mxu0 0.0
  %1484 = vmatpush1.msra.mxu0 0.0
  %1485 = vmatprep.subr.mxu0 0.0
  %1486 = vmatpush1.msra.mxu0 0.0
  %1487 = vmatprep.subr.mxu0 0.0
  %1488 = vmatpush1.msra.mxu0 0.0
  %1489 = vmatprep.subr.mxu0 0.0
  %1490 = vmatpush1.msra.mxu0 0.0
  %1491 = vmatprep.subr.mxu0 0.0
  %1492 = vmatpush1.msra.mxu0 0.0
  %1493 = vmatprep.subr.mxu0 0.0
  %1494 = vmatpush1.msra.mxu0 0.0
  %1495 = vmatprep.subr.mxu0 0.0
  %1496 = vmatpush1.msra.mxu0 %v16
  %1497 = vmatprep.subr.mxu0 0.0
  %1498 = vmatpush2.msra.mxu0 0.0
  %1499 = vmatprep.subr.mxu0 0.0
  %1500 = vmatpush2.msra.mxu0 0.0
  %1501 = vmatprep.subr.mxu0 0.0
  %1502 = vmatpush2.msra.mxu0 0.0
  %1503 = vmatprep.subr.mxu0 0.0
  %1504 = vmatpush2.msra.mxu0 0.0
  %1505 = vmatprep.subr.mxu0 0.0
  %1506 = vmatpush2.msra.mxu0 0.0
  %1507 = vmatprep.subr.mxu0 0.0
  %1508 = vmatpush2.msra.mxu0 0.0
  %1509 = vmatprep.subr.mxu0 0.0
  %1510 = vmatpush2.msra.mxu0 0.0
  %1511 = vmatprep.subr.mxu0 0.0
  %1512 = vmatpush2.msra.mxu0 0.0
  %1513 = vmatprep.subr.mxu0 0.0
  %1514 = vmatpush2.msra.mxu0 0.0
  %1515 = vmatprep.subr.mxu0 0.0
  %1516 = vmatpush2.msra.mxu0 0.0
  %1517 = vmatprep.subr.mxu0 0.0
  %1518 = vmatpush2.msra.mxu0 0.0
  %1519 = vmatprep.subr.mxu0 0.0
  %1520 = vmatpush2.msra.mxu0 0.0
  %1521 = vmatprep.subr.mxu0 0.0
  %1522 = vmatpush2.msra.mxu0 0.0
  %1523 = vmatprep.subr.mxu0 0.0
  %1524 = vmatpush2.msra.mxu0 0.0
  %1525 = vmatprep.subr.mxu0 0.0
  %1526 = vmatpush2.msra.mxu0 0.0
  %1527 = vmatprep.subr.mxu0 0.0
  %1528 = vmatpush2.msra.mxu0 0.0
  %1529 = vmatprep.mubr.f32.mxu0 0.0
  %1530 = vmatmul.mubr.f32.gmra.mxu0 %v1448
  %v1531 = vpop.f32.mrf.mxu0
  %v1532 = vadd.f32 %v1447, %v1531
  %v1533 = vpop.f32.mrf.mxu0
  %1534 = vmatprep.mubr.f32.mxu0 0.0
  %1535 = vmatmul.mubr.f32.gmra.mxu0 %v1450
  %v1536 = vpop.f32.mrf.mxu0
  %v1537 = vadd.f32 %v1447, %v1536
  %v1538 = vpop.f32.mrf.mxu0
  %1539 = vmatprep.mubr.f32.mxu0 0.0
  %1540 = vmatmul.mubr.f32.gmra.mxu0 %v1452
  %v1541 = vpop.f32.mrf.mxu0
  %v1542 = vadd.f32 %v1447, %v1541
  %v1543 = vpop.f32.mrf.mxu0
  %1544 = vmatprep.mubr.f32.mxu0 0.0
  %1545 = vmatmul.mubr.f32.gmra.mxu0 %v1454
  %v1546 = vpop.f32.mrf.mxu0
  %v1547 = vadd.f32 %v1447, %v1546
  %v1548 = vpop.f32.mrf.mxu0
  %1549 = vmatprep.mubr.f32.mxu0 0.0
  %1550 = vmatmul.mubr.f32.gmra.mxu0 %v1456
  %v1551 = vpop.f32.mrf.mxu0
  %v1552 = vadd.f32 %v1447, %v1551
  %v1553 = vpop.f32.mrf.mxu0
  %1554 = vmatprep.mubr.f32.mxu0 0.0
  %1555 = vmatmul.mubr.f32.gmra.mxu0 %v1458
  %v1556 = vpop.f32.mrf.mxu0
  %v1557 = vadd.f32 %v1447, %v1556
  %v1558 = vpop.f32.mrf.mxu0
  %1559 = vmatprep.mubr.f32.mxu0 0.0
  %1560 = vmatmul.mubr.f32.gmra.mxu0 %v1460
  %v1561 = vpop.f32.mrf.mxu0
  %v1562 = vadd.f32 %v1447, %v1561
  %v1563 = vpop.f32.mrf.mxu0
  %1564 = vmatprep.mubr.f32.mxu0 0.0
  %1565 = vmatmul.mubr.f32.gmra.mxu0 %v1463
  %v1566 = vpop.f32.mrf.mxu0
  %v1567 = vadd.f32 %v1447, %v1566
  %v1568 = vpop.f32.mrf.mxu0
  %1569 = vdwg.mxu0
  %1570 = vst.msk [vmem:[%s2] sm:$0xff] %vm76, %v1532
  %1571 = vst.msk [vmem:[%s2 + $0x8] sm:$0xff] %vm76, %v1537
  %1572 = vst.msk [vmem:[%s2 + $0x10] sm:$0xff] %vm76, %v1542
  %1573 = vst.msk [vmem:[%s2 + $0x18] sm:$0xff] %vm76, %v1547
  %1574 = vst.msk [vmem:[%s2 + $0x20] sm:$0xff] %vm76, %v1552
  %1575 = vst.msk [vmem:[%s2 + $0x28] sm:$0xff] %vm76, %v1557
  %1576 = vst.msk [vmem:[%s2 + $0x30] sm:$0xff] %vm76, %v1562
  %1577 = vst.msk [vmem:[%s2 + $0x38] sm:$0xff] %vm76, %v1567
  // Predicated region
  $region10: #{model_forward.1} parent=0 // pred_check
    _
  $region11: #{model_forward.1} parent=0 // pred_check_branch
    %1579 = sbr.rel (0) target = $region13
  $region12: #{model_forward.1} parent=0 // pred_region
    _
  $region13: #{model_forward.1} parent=0 // pred_fallthru
    _
  // Predicated region
  $region14: #{model_forward.1} parent=0 // pred_check
    _
  $region15: #{model_forward.1} parent=0 // pred_check_branch
    %1581 = sbr.rel (0) target = $region17
  $region16: #{model_forward.1} parent=0 // pred_region
    _
  $region17: #{model_forward.1} parent=0 // pred_fallthru
    _

</llo_original>
